<compile_context>
chip_gen: v6e
topology: v6e:2x2x1
jax: 0.10.0
libtpu: 0.0.40
codegen_flags: <defaults>
</compile_context>

<pallas_src>
import jax
import jax.numpy as jnp
from jax import lax
from jax.experimental import pallas as pl
from jax.experimental.pallas import tpu as pltpu


# ----------------------------- kernel -------------------------------------

def process_ts_kernel(xe_ref, xo_ref,
                      w11l_ref, w11c_ref, w11r_ref, b11_ref,
                      w12l_ref, w12c_ref, w12r_ref, b12_ref,
                      w21l_ref, w21c_ref, w21r_ref, b21_ref,
                      w22l_ref, w22c_ref, w22r_ref, b22_ref,
                      wf_ref, bf_ref,
                      o_ref):
    f32 = jnp.float32
    bf16 = jnp.bfloat16

    xe = xe_ref[0]                       # (Th, 1) f32, x at even positions 2i
    xo = xo_ref[0]                       # (Th, 1) f32, x at odd  positions 2i+1

    # ---- conv1_1 (1 -> 64, k=3, replicate pad) on the VPU ------------------
    # out[t] = w0*x[t-1] + w1*x[t] + w2*x[t+1] + b
    w0, w1, w2 = w11l_ref[...], w11c_ref[...], w11r_ref[...]   # each (1, 64)
    b11 = b11_ref[...]
    x_prev_e = jnp.concatenate([xe[:1], xo[:-1]], axis=0)   # x[2i-1]; x[-1]->x[0]
    x_next_o = jnp.concatenate([xe[1:], xo[-1:]], axis=0)   # x[2i+2]; x[T]->x[T-1]
    h1e = jnp.maximum(x_prev_e * w0 + xe * w1 + xo * w2 + b11, 0.0)  # (Th, 64)
    h1o = jnp.maximum(xe * w0 + xo * w1 + x_next_o * w2 + b11, 0.0)  # (Th, 64)

    # ---- k=3 conv as three bf16 tap-matmuls accumulated in f32 -------------
    def c3(left, center, right, wl_ref, wc_ref, wr_ref, b_ref):
        acc = jnp.dot(left.astype(bf16), wl_ref[...], preferred_element_type=f32)
        acc = acc + jnp.dot(center.astype(bf16), wc_ref[...],
                            preferred_element_type=f32)
        acc = acc + jnp.dot(right.astype(bf16), wr_ref[...],
                            preferred_element_type=f32)
        return jnp.maximum(acc + b_ref[...], 0.0)

    # ---- conv1_2 (64 -> 64), even/odd output streams ------------------------
    h1_prev_e = jnp.concatenate([h1e[:1], h1o[:-1]], axis=0)  # h1[2i-1]; edge->h1[0]
    h1_next_o = jnp.concatenate([h1e[1:], h1o[-1:]], axis=0)  # h1[2i+2]; edge->h1[T-1]
    h2e = c3(h1_prev_e, h1e, h1o, w12l_ref, w12c_ref, w12r_ref, b12_ref)
    h2o = c3(h1e, h1o, h1_next_o, w12l_ref, w12c_ref, w12r_ref, b12_ref)

    # ---- MaxPool1d(2, 2): elementwise max of the two streams ---------------
    p = jnp.maximum(h2e, h2o)                                  # (Th, 64) f32

    # ---- conv2_1 (64 -> 128) on the pooled timeline -------------------------
    p_l = jnp.concatenate([p[:1], p[:-1]], axis=0)
    p_r = jnp.concatenate([p[1:], p[-1:]], axis=0)
    h3 = c3(p_l, p, p_r, w21l_ref, w21c_ref, w21r_ref, b21_ref)   # (Th, 128)

    # ---- conv2_2 (128 -> 128) ------------------------------------------------
    h3_l = jnp.concatenate([h3[:1], h3[:-1]], axis=0)
    h3_r = jnp.concatenate([h3[1:], h3[-1:]], axis=0)
    h4 = c3(h3_l, h3, h3_r, w22l_ref, w22c_ref, w22r_ref, b22_ref)  # (Th, 128)

    # ---- fconv (1x1, 128 -> 1): broadcast-mul + cross-lane reduce, clamp ----
    y = jnp.sum(h4 * wf_ref[...], axis=-1, keepdims=True) + bf_ref[...]
    o_ref[0] = jnp.clip(y, -1.0, 1.0)                            # (Th, 1)


# ----------------------------- wrapper -------------------------------------

def process_ts_pallas(x, params):
    """x: (B, T) float32 -> (B, T//2) float32 (matches torch ProcessTS.forward)."""
    B, T = x.shape
    assert T % 2 == 0 and T >= 2
    Th = T // 2

    x = x.astype(jnp.float32)
    x_e = x[:, 0::2][:, :, None]           # (B, Th, 1)
    x_o = x[:, 1::2][:, :, None]           # (B, Th, 1)

    flat_weights = tuple(params)           # 18 arrays, see prepare_params

    def full_spec(a):
        return pl.BlockSpec(a.shape, lambda b, nd=a.ndim: (0,) * nd)

    io_spec = pl.BlockSpec((1, Th, 1), lambda b: (b, 0, 0))

    out = pl.pallas_call(
        process_ts_kernel,
        out_shape=jax.ShapeDtypeStruct((B, Th, 1), jnp.float32),
        grid=(B,),
        in_specs=[io_spec, io_spec] + [full_spec(a) for a in flat_weights],
        out_specs=pl.BlockSpec((1, Th, 1), lambda b: (b, 0, 0)),
        compiler_params=pltpu.CompilerParams(
            dimension_semantics=("parallel",)),
    )(x_e, x_o, *flat_weights)
    return out[:, :, 0]


# ----------------------- parameter construction ----------------------------

def xavier_conv(key, cout, cin, k):
    """PyTorch layout (Cout, Cin, K), xavier_uniform_ (gain=1)."""
    fan_in, fan_out = cin * k, cout * k
    bound = (6.0 / (fan_in + fan_out)) ** 0.5
    return jax.random.uniform(key, (cout, cin, k), jnp.float32, -bound, bound)


def prepare_params(w11, b11, w12, b12, w21, b21, w22, b22, wf, bf):
    """PyTorch Conv1d-layout weights -> kernel layout.

    k=3 conv weights (Cout, Cin, 3) become three (Cin, Cout) tap matrices
    (tap 0 = in[t-1], tap 1 = in[t], tap 2 = in[t+1]).  The MXU tap matrices
    are stored in bf16; conv1_1 rows, biases and fconv stay f32.
    """
    def taps_bf16(w):
        return tuple(jnp.transpose(w[:, :, k]).astype(jnp.bfloat16)
                     for k in range(3))

    def taps_rows_f32(w):                       # Cin == 1 -> three (1, Cout) rows
        return tuple(w[:, 0, k][None, :].astype(jnp.float32) for k in range(3))

    def bias_row(b):
        return jnp.asarray(b, jnp.float32).reshape(1, -1)

    wf_row = wf[:, :, 0].astype(jnp.float32)    # (1, 128)
    return (*taps_rows_f32(w11), bias_row(b11),
            *taps_bf16(w12), bias_row(b12),
            *taps_bf16(w21), bias_row(b21),
            *taps_bf16(w22), bias_row(b22),
            wf_row, bias_row(bf))


# ----------------------- pure-JAX reference (NCL) ---------------------------

def ref_forward(x, w11, b11, w12, b12, w21, b21, w22, b22, wf, bf):
    def conv(h, w, b, pad):
        if pad:
            h = jnp.pad(h, ((0, 0), (0, 0), (1, 1)), mode="edge")  # replicate
        out = lax.conv_general_dilated(
            h, w, window_strides=(1,), padding="VALID",
            dimension_numbers=("NCH", "OIH", "NCH"),
            precision=lax.Precision.HIGHEST)
        return out + b.reshape(1, -1, 1)

    h = x[:, None, :]                                   # (B, 1, T)
    h = jnp.maximum(conv(h, w11, b11, True), 0.0)
    h = jnp.maximum(conv(h, w12, b12, True), 0.0)
    h = jnp.maximum(h[:, :, 0::2], h[:, :, 1::2])       # MaxPool1d(2, 2)
    h = jnp.maximum(conv(h, w21, b21, True), 0.0)
    h = jnp.maximum(conv(h, w22, b22, True), 0.0)
    y = conv(h, wf, bf, False)
    y = jnp.clip(y, -1.0, 1.0)
    return y[:, 0, :]                                   # (B, T//2)


# --------------------------------- main -------------------------------------

if __name__ == "__main__":
    key = jax.random.PRNGKey(0)
    kw11, kw12, kw21, kw22, kwf, kx = jax.random.split(key, 6)

    B, T = 2, 16

    # Deterministic xavier-uniform weights (PyTorch Conv1d layout), zero biases
    # exactly as in ProcessTS.initialize_weight.
    w11 = xavier_conv(kw11, 64, 1, 3)
    w12 = xavier_conv(kw12, 64, 64, 3)
    w21 = xavier_conv(kw21, 128, 64, 3)
    w22 = xavier_conv(kw22, 128, 128, 3)
    wf = xavier_conv(kwf, 1, 128, 1)
    b11 = jnp.zeros((64,), jnp.float32)
    b12 = jnp.zeros((64,), jnp.float32)
    b21 = jnp.zeros((128,), jnp.float32)
    b22 = jnp.zeros((128,), jnp.float32)
    bf = jnp.zeros((1,), jnp.float32)

    x = jax.random.normal(kx, (B, T), jnp.float32)

    params = prepare_params(w11, b11, w12, b12, w21, b21, w22, b22, wf, bf)

    y = process_ts_pallas(x, params)
    y = jax.block_until_ready(y)

    y_ref = ref_forward(x, w11, b11, w12, b12, w21, b21, w22, b22, wf, bf)

    assert y.shape == (B, T // 2), y.shape
    # bf16 MXU operands with f32 accumulation -> looser tolerance than pure f32.
    assert jnp.allclose(y, y_ref, atol=2e-2, rtol=2e-2), (y, y_ref)
    print("KERNEL_OK")
</pallas_src>

<mosaic_0001>
module attributes {stable_mosaic.version = 11 : i64} {
  func.func @process_ts_kernel(%arg0: i32, %arg1: memref<1x8x1xf32, #tpu.memory_space<vmem>>, %arg2: memref<1x8x1xf32, #tpu.memory_space<vmem>>, %arg3: memref<1x64xf32, #tpu.memory_space<vmem>>, %arg4: memref<1x64xf32, #tpu.memory_space<vmem>>, %arg5: memref<1x64xf32, #tpu.memory_space<vmem>>, %arg6: memref<1x64xf32, #tpu.memory_space<vmem>>, %arg7: memref<64x64xbf16, #tpu.memory_space<vmem>>, %arg8: memref<64x64xbf16, #tpu.memory_space<vmem>>, %arg9: memref<64x64xbf16, #tpu.memory_space<vmem>>, %arg10: memref<1x64xf32, #tpu.memory_space<vmem>>, %arg11: memref<64x128xbf16, #tpu.memory_space<vmem>>, %arg12: memref<64x128xbf16, #tpu.memory_space<vmem>>, %arg13: memref<64x128xbf16, #tpu.memory_space<vmem>>, %arg14: memref<1x128xf32, #tpu.memory_space<vmem>>, %arg15: memref<128x128xbf16, #tpu.memory_space<vmem>>, %arg16: memref<128x128xbf16, #tpu.memory_space<vmem>>, %arg17: memref<128x128xbf16, #tpu.memory_space<vmem>>, %arg18: memref<1x128xf32, #tpu.memory_space<vmem>>, %arg19: memref<1x128xf32, #tpu.memory_space<vmem>>, %arg20: memref<1x1xf32, #tpu.memory_space<vmem>>, %arg21: memref<1x8x1xf32, #tpu.memory_space<vmem>>) attributes {dimension_semantics = [#tpu.dimension_semantics<parallel>], iteration_bounds = array<i64: 2>, scalar_prefetch = 0 : i64, scratch_operands = 0 : i64, tpu.core_type = #tpu.core_type<tc>, window_params = [{transform_indices = @transform_0, window_bounds = array<i64: 1, 8, 1>}, {transform_indices = @transform_1, window_bounds = array<i64: 1, 8, 1>}, {pipeline_mode = #tpu.pipeline_mode<synchronous>, transform_indices = @transform_2, window_bounds = array<i64: 1, 64>}, {pipeline_mode = #tpu.pipeline_mode<synchronous>, transform_indices = @transform_3, window_bounds = array<i64: 1, 64>}, {pipeline_mode = #tpu.pipeline_mode<synchronous>, transform_indices = @transform_4, window_bounds = array<i64: 1, 64>}, {pipeline_mode = #tpu.pipeline_mode<synchronous>, transform_indices = @transform_5, window_bounds = array<i64: 1, 64>}, {pipeline_mode = #tpu.pipeline_mode<synchronous>, transform_indices = @transform_6, window_bounds = array<i64: 64, 64>}, {pipeline_mode = #tpu.pipeline_mode<synchronous>, transform_indices = @transform_7, window_bounds = array<i64: 64, 64>}, {pipeline_mode = #tpu.pipeline_mode<synchronous>, transform_indices = @transform_8, window_bounds = array<i64: 64, 64>}, {pipeline_mode = #tpu.pipeline_mode<synchronous>, transform_indices = @transform_9, window_bounds = array<i64: 1, 64>}, {pipeline_mode = #tpu.pipeline_mode<synchronous>, transform_indices = @transform_10, window_bounds = array<i64: 64, 128>}, {pipeline_mode = #tpu.pipeline_mode<synchronous>, transform_indices = @transform_11, window_bounds = array<i64: 64, 128>}, {pipeline_mode = #tpu.pipeline_mode<synchronous>, transform_indices = @transform_12, window_bounds = array<i64: 64, 128>}, {pipeline_mode = #tpu.pipeline_mode<synchronous>, transform_indices = @transform_13, window_bounds = array<i64: 1, 128>}, {pipeline_mode = #tpu.pipeline_mode<synchronous>, transform_indices = @transform_14, window_bounds = array<i64: 128, 128>}, {pipeline_mode = #tpu.pipeline_mode<synchronous>, transform_indices = @transform_15, window_bounds = array<i64: 128, 128>}, {pipeline_mode = #tpu.pipeline_mode<synchronous>, transform_indices = @transform_16, window_bounds = array<i64: 128, 128>}, {pipeline_mode = #tpu.pipeline_mode<synchronous>, transform_indices = @transform_17, window_bounds = array<i64: 1, 128>}, {pipeline_mode = #tpu.pipeline_mode<synchronous>, transform_indices = @transform_18, window_bounds = array<i64: 1, 128>}, {pipeline_mode = #tpu.pipeline_mode<synchronous>, transform_indices = @transform_19, window_bounds = array<i64: 1, 1>}, {transform_indices = @transform_20, window_bounds = array<i64: 1, 8, 1>}]} {
    %c0 = arith.constant 0 : index
    %c0_0 = arith.constant 0 : index
    %c0_1 = arith.constant 0 : index
    %0 = vector.load %arg1[%c0, %c0_0, %c0_1] : memref<1x8x1xf32, #tpu.memory_space<vmem>>, vector<1x8x1xf32>
    %1 = vector.shape_cast %0 : vector<1x8x1xf32> to vector<8x1xf32>
    %c0_2 = arith.constant 0 : index
    %c0_3 = arith.constant 0 : index
    %c0_4 = arith.constant 0 : index
    %2 = vector.load %arg2[%c0_2, %c0_3, %c0_4] : memref<1x8x1xf32, #tpu.memory_space<vmem>>, vector<1x8x1xf32>
    %3 = vector.shape_cast %2 : vector<1x8x1xf32> to vector<8x1xf32>
    %c0_5 = arith.constant 0 : index
    %c0_6 = arith.constant 0 : index
    %4 = vector.load %arg3[%c0_5, %c0_6] : memref<1x64xf32, #tpu.memory_space<vmem>>, vector<1x64xf32>
    %c0_7 = arith.constant 0 : index
    %c0_8 = arith.constant 0 : index
    %5 = vector.load %arg4[%c0_7, %c0_8] : memref<1x64xf32, #tpu.memory_space<vmem>>, vector<1x64xf32>
    %c0_9 = arith.constant 0 : index
    %c0_10 = arith.constant 0 : index
    %6 = vector.load %arg5[%c0_9, %c0_10] : memref<1x64xf32, #tpu.memory_space<vmem>>, vector<1x64xf32>
    %c0_11 = arith.constant 0 : index
    %c0_12 = arith.constant 0 : index
    %7 = vector.load %arg6[%c0_11, %c0_12] : memref<1x64xf32, #tpu.memory_space<vmem>>, vector<1x64xf32>
    %8 = vector.extract_strided_slice %1 {offsets = [0, 0], sizes = [1, 1], strides = [1, 1]} : vector<8x1xf32> to vector<1x1xf32>
    %9 = vector.extract_strided_slice %3 {offsets = [0, 0], sizes = [7, 1], strides = [1, 1]} : vector<8x1xf32> to vector<7x1xf32>
    %10 = tpu.concatenate %8, %9 in 0 : vector<1x1xf32>, vector<7x1xf32> -> vector<8x1xf32>
    %11 = vector.extract_strided_slice %1 {offsets = [1, 0], sizes = [7, 1], strides = [1, 1]} : vector<8x1xf32> to vector<7x1xf32>
    %12 = vector.extract_strided_slice %3 {offsets = [7, 0], sizes = [1, 1], strides = [1, 1]} : vector<8x1xf32> to vector<1x1xf32>
    %13 = tpu.concatenate %11, %12 in 0 : vector<7x1xf32>, vector<1x1xf32> -> vector<8x1xf32>
    %14 = vector.broadcast %10 : vector<8x1xf32> to vector<8x64xf32>
    %15 = vector.broadcast %4 : vector<1x64xf32> to vector<8x64xf32>
    %16 = arith.mulf %14, %15 : vector<8x64xf32>
    %17 = vector.broadcast %1 : vector<8x1xf32> to vector<8x64xf32>
    %18 = vector.broadcast %5 : vector<1x64xf32> to vector<8x64xf32>
    %19 = arith.mulf %17, %18 : vector<8x64xf32>
    %20 = arith.addf %16, %19 : vector<8x64xf32>
    %21 = vector.broadcast %3 : vector<8x1xf32> to vector<8x64xf32>
    %22 = vector.broadcast %6 : vector<1x64xf32> to vector<8x64xf32>
    %23 = arith.mulf %21, %22 : vector<8x64xf32>
    %24 = arith.addf %20, %23 : vector<8x64xf32>
    %25 = vector.broadcast %7 : vector<1x64xf32> to vector<8x64xf32>
    %26 = arith.addf %24, %25 : vector<8x64xf32>
    %cst = arith.constant 0.000000e+00 : f32
    %27 = vector.broadcast %cst : f32 to vector<8x64xf32>
    %28 = arith.maximumf %26, %27 : vector<8x64xf32>
    %29 = vector.broadcast %1 : vector<8x1xf32> to vector<8x64xf32>
    %30 = vector.broadcast %4 : vector<1x64xf32> to vector<8x64xf32>
    %31 = arith.mulf %29, %30 : vector<8x64xf32>
    %32 = vector.broadcast %3 : vector<8x1xf32> to vector<8x64xf32>
    %33 = vector.broadcast %5 : vector<1x64xf32> to vector<8x64xf32>
    %34 = arith.mulf %32, %33 : vector<8x64xf32>
    %35 = arith.addf %31, %34 : vector<8x64xf32>
    %36 = vector.broadcast %13 : vector<8x1xf32> to vector<8x64xf32>
    %37 = vector.broadcast %6 : vector<1x64xf32> to vector<8x64xf32>
    %38 = arith.mulf %36, %37 : vector<8x64xf32>
    %39 = arith.addf %35, %38 : vector<8x64xf32>
    %40 = vector.broadcast %7 : vector<1x64xf32> to vector<8x64xf32>
    %41 = arith.addf %39, %40 : vector<8x64xf32>
    %cst_13 = arith.constant 0.000000e+00 : f32
    %42 = vector.broadcast %cst_13 : f32 to vector<8x64xf32>
    %43 = arith.maximumf %41, %42 : vector<8x64xf32>
    %44 = vector.extract_strided_slice %28 {offsets = [0, 0], sizes = [1, 64], strides = [1, 1]} : vector<8x64xf32> to vector<1x64xf32>
    %45 = vector.extract_strided_slice %43 {offsets = [0, 0], sizes = [7, 64], strides = [1, 1]} : vector<8x64xf32> to vector<7x64xf32>
    %46 = tpu.concatenate %44, %45 in 0 : vector<1x64xf32>, vector<7x64xf32> -> vector<8x64xf32>
    %47 = vector.extract_strided_slice %28 {offsets = [1, 0], sizes = [7, 64], strides = [1, 1]} : vector<8x64xf32> to vector<7x64xf32>
    %48 = vector.extract_strided_slice %43 {offsets = [7, 0], sizes = [1, 64], strides = [1, 1]} : vector<8x64xf32> to vector<1x64xf32>
    %49 = tpu.concatenate %47, %48 in 0 : vector<7x64xf32>, vector<1x64xf32> -> vector<8x64xf32>
    %50 = arith.truncf %46 : vector<8x64xf32> to vector<8x64xbf16>
    %c0_14 = arith.constant 0 : index
    %c0_15 = arith.constant 0 : index
    %51 = vector.load %arg7[%c0_14, %c0_15] : memref<64x64xbf16, #tpu.memory_space<vmem>>, vector<64x64xbf16>
    %cst_16 = arith.constant dense<0.000000e+00> : vector<8x64xf32>
    %52 = tpu.matmul %50, %51, %cst_16 {dimension_numbers = #tpu.dot_dimension_numbers<[1], [0], [0], [1], [0, 0, 1, 1], [], []>} : vector<8x64xbf16>, vector<64x64xbf16>, vector<8x64xf32> -> vector<8x64xf32>
    %53 = arith.truncf %28 : vector<8x64xf32> to vector<8x64xbf16>
    %c0_17 = arith.constant 0 : index
    %c0_18 = arith.constant 0 : index
    %54 = vector.load %arg8[%c0_17, %c0_18] : memref<64x64xbf16, #tpu.memory_space<vmem>>, vector<64x64xbf16>
    %cst_19 = arith.constant dense<0.000000e+00> : vector<8x64xf32>
    %55 = tpu.matmul %53, %54, %cst_19 {dimension_numbers = #tpu.dot_dimension_numbers<[1], [0], [0], [1], [0, 0, 1, 1], [], []>} : vector<8x64xbf16>, vector<64x64xbf16>, vector<8x64xf32> -> vector<8x64xf32>
    %56 = arith.addf %52, %55 : vector<8x64xf32>
    %57 = arith.truncf %43 : vector<8x64xf32> to vector<8x64xbf16>
    %c0_20 = arith.constant 0 : index
    %c0_21 = arith.constant 0 : index
    %58 = vector.load %arg9[%c0_20, %c0_21] : memref<64x64xbf16, #tpu.memory_space<vmem>>, vector<64x64xbf16>
    %cst_22 = arith.constant dense<0.000000e+00> : vector<8x64xf32>
    %59 = tpu.matmul %57, %58, %cst_22 {dimension_numbers = #tpu.dot_dimension_numbers<[1], [0], [0], [1], [0, 0, 1, 1], [], []>} : vector<8x64xbf16>, vector<64x64xbf16>, vector<8x64xf32> -> vector<8x64xf32>
    %60 = arith.addf %56, %59 : vector<8x64xf32>
    %c0_23 = arith.constant 0 : index
    %c0_24 = arith.constant 0 : index
    %61 = vector.load %arg10[%c0_23, %c0_24] : memref<1x64xf32, #tpu.memory_space<vmem>>, vector<1x64xf32>
    %62 = vector.broadcast %61 : vector<1x64xf32> to vector<8x64xf32>
    %63 = arith.addf %60, %62 : vector<8x64xf32>
    %cst_25 = arith.constant 0.000000e+00 : f32
    %64 = vector.broadcast %cst_25 : f32 to vector<8x64xf32>
    %65 = arith.maximumf %63, %64 : vector<8x64xf32>
    %66 = arith.truncf %28 : vector<8x64xf32> to vector<8x64xbf16>
    %c0_26 = arith.constant 0 : index
    %c0_27 = arith.constant 0 : index
    %67 = vector.load %arg7[%c0_26, %c0_27] : memref<64x64xbf16, #tpu.memory_space<vmem>>, vector<64x64xbf16>
    %cst_28 = arith.constant dense<0.000000e+00> : vector<8x64xf32>
    %68 = tpu.matmul %66, %67, %cst_28 {dimension_numbers = #tpu.dot_dimension_numbers<[1], [0], [0], [1], [0, 0, 1, 1], [], []>} : vector<8x64xbf16>, vector<64x64xbf16>, vector<8x64xf32> -> vector<8x64xf32>
    %69 = arith.truncf %43 : vector<8x64xf32> to vector<8x64xbf16>
    %c0_29 = arith.constant 0 : index
    %c0_30 = arith.constant 0 : index
    %70 = vector.load %arg8[%c0_29, %c0_30] : memref<64x64xbf16, #tpu.memory_space<vmem>>, vector<64x64xbf16>
    %cst_31 = arith.constant dense<0.000000e+00> : vector<8x64xf32>
    %71 = tpu.matmul %69, %70, %cst_31 {dimension_numbers = #tpu.dot_dimension_numbers<[1], [0], [0], [1], [0, 0, 1, 1], [], []>} : vector<8x64xbf16>, vector<64x64xbf16>, vector<8x64xf32> -> vector<8x64xf32>
    %72 = arith.addf %68, %71 : vector<8x64xf32>
    %73 = arith.truncf %49 : vector<8x64xf32> to vector<8x64xbf16>
    %c0_32 = arith.constant 0 : index
    %c0_33 = arith.constant 0 : index
    %74 = vector.load %arg9[%c0_32, %c0_33] : memref<64x64xbf16, #tpu.memory_space<vmem>>, vector<64x64xbf16>
    %cst_34 = arith.constant dense<0.000000e+00> : vector<8x64xf32>
    %75 = tpu.matmul %73, %74, %cst_34 {dimension_numbers = #tpu.dot_dimension_numbers<[1], [0], [0], [1], [0, 0, 1, 1], [], []>} : vector<8x64xbf16>, vector<64x64xbf16>, vector<8x64xf32> -> vector<8x64xf32>
    %76 = arith.addf %72, %75 : vector<8x64xf32>
    %c0_35 = arith.constant 0 : index
    %c0_36 = arith.constant 0 : index
    %77 = vector.load %arg10[%c0_35, %c0_36] : memref<1x64xf32, #tpu.memory_space<vmem>>, vector<1x64xf32>
    %78 = vector.broadcast %77 : vector<1x64xf32> to vector<8x64xf32>
    %79 = arith.addf %76, %78 : vector<8x64xf32>
    %cst_37 = arith.constant 0.000000e+00 : f32
    %80 = vector.broadcast %cst_37 : f32 to vector<8x64xf32>
    %81 = arith.maximumf %79, %80 : vector<8x64xf32>
    %82 = arith.maximumf %65, %81 : vector<8x64xf32>
    %83 = vector.extract_strided_slice %82 {offsets = [0, 0], sizes = [1, 64], strides = [1, 1]} : vector<8x64xf32> to vector<1x64xf32>
    %84 = vector.extract_strided_slice %82 {offsets = [0, 0], sizes = [7, 64], strides = [1, 1]} : vector<8x64xf32> to vector<7x64xf32>
    %85 = tpu.concatenate %83, %84 in 0 : vector<1x64xf32>, vector<7x64xf32> -> vector<8x64xf32>
    %86 = vector.extract_strided_slice %82 {offsets = [1, 0], sizes = [7, 64], strides = [1, 1]} : vector<8x64xf32> to vector<7x64xf32>
    %87 = vector.extract_strided_slice %82 {offsets = [7, 0], sizes = [1, 64], strides = [1, 1]} : vector<8x64xf32> to vector<1x64xf32>
    %88 = tpu.concatenate %86, %87 in 0 : vector<7x64xf32>, vector<1x64xf32> -> vector<8x64xf32>
    %89 = arith.truncf %85 : vector<8x64xf32> to vector<8x64xbf16>
    %c0_38 = arith.constant 0 : index
    %c0_39 = arith.constant 0 : index
    %90 = vector.load %arg11[%c0_38, %c0_39] : memref<64x128xbf16, #tpu.memory_space<vmem>>, vector<64x128xbf16>
    %cst_40 = arith.constant dense<0.000000e+00> : vector<8x128xf32>
    %91 = tpu.matmul %89, %90, %cst_40 {dimension_numbers = #tpu.dot_dimension_numbers<[1], [0], [0], [1], [0, 0, 1, 1], [], []>} : vector<8x64xbf16>, vector<64x128xbf16>, vector<8x128xf32> -> vector<8x128xf32>
    %92 = arith.truncf %82 : vector<8x64xf32> to vector<8x64xbf16>
    %c0_41 = arith.constant 0 : index
    %c0_42 = arith.constant 0 : index
    %93 = vector.load %arg12[%c0_41, %c0_42] : memref<64x128xbf16, #tpu.memory_space<vmem>>, vector<64x128xbf16>
    %cst_43 = arith.constant dense<0.000000e+00> : vector<8x128xf32>
    %94 = tpu.matmul %92, %93, %cst_43 {dimension_numbers = #tpu.dot_dimension_numbers<[1], [0], [0], [1], [0, 0, 1, 1], [], []>} : vector<8x64xbf16>, vector<64x128xbf16>, vector<8x128xf32> -> vector<8x128xf32>
    %95 = arith.addf %91, %94 : vector<8x128xf32>
    %96 = arith.truncf %88 : vector<8x64xf32> to vector<8x64xbf16>
    %c0_44 = arith.constant 0 : index
    %c0_45 = arith.constant 0 : index
    %97 = vector.load %arg13[%c0_44, %c0_45] : memref<64x128xbf16, #tpu.memory_space<vmem>>, vector<64x128xbf16>
    %cst_46 = arith.constant dense<0.000000e+00> : vector<8x128xf32>
    %98 = tpu.matmul %96, %97, %cst_46 {dimension_numbers = #tpu.dot_dimension_numbers<[1], [0], [0], [1], [0, 0, 1, 1], [], []>} : vector<8x64xbf16>, vector<64x128xbf16>, vector<8x128xf32> -> vector<8x128xf32>
    %99 = arith.addf %95, %98 : vector<8x128xf32>
    %c0_47 = arith.constant 0 : index
    %c0_48 = arith.constant 0 : index
    %100 = vector.load %arg14[%c0_47, %c0_48] : memref<1x128xf32, #tpu.memory_space<vmem>>, vector<1x128xf32>
    %101 = vector.broadcast %100 : vector<1x128xf32> to vector<8x128xf32>
    %102 = arith.addf %99, %101 : vector<8x128xf32>
    %cst_49 = arith.constant 0.000000e+00 : f32
    %103 = vector.broadcast %cst_49 : f32 to vector<8x128xf32>
    %104 = arith.maximumf %102, %103 : vector<8x128xf32>
    %105 = vector.extract_strided_slice %104 {offsets = [0, 0], sizes = [1, 128], strides = [1, 1]} : vector<8x128xf32> to vector<1x128xf32>
    %106 = vector.extract_strided_slice %104 {offsets = [0, 0], sizes = [7, 128], strides = [1, 1]} : vector<8x128xf32> to vector<7x128xf32>
    %107 = tpu.concatenate %105, %106 in 0 : vector<1x128xf32>, vector<7x128xf32> -> vector<8x128xf32>
    %108 = vector.extract_strided_slice %104 {offsets = [1, 0], sizes = [7, 128], strides = [1, 1]} : vector<8x128xf32> to vector<7x128xf32>
    %109 = vector.extract_strided_slice %104 {offsets = [7, 0], sizes = [1, 128], strides = [1, 1]} : vector<8x128xf32> to vector<1x128xf32>
    %110 = tpu.concatenate %108, %109 in 0 : vector<7x128xf32>, vector<1x128xf32> -> vector<8x128xf32>
    %111 = arith.truncf %107 : vector<8x128xf32> to vector<8x128xbf16>
    %c0_50 = arith.constant 0 : index
    %c0_51 = arith.constant 0 : index
    %112 = vector.load %arg15[%c0_50, %c0_51] : memref<128x128xbf16, #tpu.memory_space<vmem>>, vector<128x128xbf16>
    %cst_52 = arith.constant dense<0.000000e+00> : vector<8x128xf32>
    %113 = tpu.matmul %111, %112, %cst_52 {dimension_numbers = #tpu.dot_dimension_numbers<[1], [0], [0], [1], [0, 0, 1, 1], [], []>} : vector<8x128xbf16>, vector<128x128xbf16>, vector<8x128xf32> -> vector<8x128xf32>
    %114 = arith.truncf %104 : vector<8x128xf32> to vector<8x128xbf16>
    %c0_53 = arith.constant 0 : index
    %c0_54 = arith.constant 0 : index
    %115 = vector.load %arg16[%c0_53, %c0_54] : memref<128x128xbf16, #tpu.memory_space<vmem>>, vector<128x128xbf16>
    %cst_55 = arith.constant dense<0.000000e+00> : vector<8x128xf32>
    %116 = tpu.matmul %114, %115, %cst_55 {dimension_numbers = #tpu.dot_dimension_numbers<[1], [0], [0], [1], [0, 0, 1, 1], [], []>} : vector<8x128xbf16>, vector<128x128xbf16>, vector<8x128xf32> -> vector<8x128xf32>
    %117 = arith.addf %113, %116 : vector<8x128xf32>
    %118 = arith.truncf %110 : vector<8x128xf32> to vector<8x128xbf16>
    %c0_56 = arith.constant 0 : index
    %c0_57 = arith.constant 0 : index
    %119 = vector.load %arg17[%c0_56, %c0_57] : memref<128x128xbf16, #tpu.memory_space<vmem>>, vector<128x128xbf16>
    %cst_58 = arith.constant dense<0.000000e+00> : vector<8x128xf32>
    %120 = tpu.matmul %118, %119, %cst_58 {dimension_numbers = #tpu.dot_dimension_numbers<[1], [0], [0], [1], [0, 0, 1, 1], [], []>} : vector<8x128xbf16>, vector<128x128xbf16>, vector<8x128xf32> -> vector<8x128xf32>
    %121 = arith.addf %117, %120 : vector<8x128xf32>
    %c0_59 = arith.constant 0 : index
    %c0_60 = arith.constant 0 : index
    %122 = vector.load %arg18[%c0_59, %c0_60] : memref<1x128xf32, #tpu.memory_space<vmem>>, vector<1x128xf32>
    %123 = vector.broadcast %122 : vector<1x128xf32> to vector<8x128xf32>
    %124 = arith.addf %121, %123 : vector<8x128xf32>
    %cst_61 = arith.constant 0.000000e+00 : f32
    %125 = vector.broadcast %cst_61 : f32 to vector<8x128xf32>
    %126 = arith.maximumf %124, %125 : vector<8x128xf32>
    %c0_62 = arith.constant 0 : index
    %c0_63 = arith.constant 0 : index
    %127 = vector.load %arg19[%c0_62, %c0_63] : memref<1x128xf32, #tpu.memory_space<vmem>>, vector<1x128xf32>
    %128 = vector.broadcast %127 : vector<1x128xf32> to vector<8x128xf32>
    %129 = arith.mulf %126, %128 : vector<8x128xf32>
    %cst_64 = arith.constant dense<0.000000e+00> : vector<8xf32>
    %130 = vector.multi_reduction <add>, %129, %cst_64 [1] : vector<8x128xf32> to vector<8xf32>
    %131 = vector.shape_cast %130 : vector<8xf32> to vector<8x1xf32>
    %c0_65 = arith.constant 0 : index
    %c0_66 = arith.constant 0 : index
    %132 = vector.load %arg20[%c0_65, %c0_66] : memref<1x1xf32, #tpu.memory_space<vmem>>, vector<1x1xf32>
    %133 = vector.broadcast %132 : vector<1x1xf32> to vector<8x1xf32>
    %134 = arith.addf %131, %133 : vector<8x1xf32>
    %cst_67 = arith.constant -1.000000e+00 : f32
    %cst_68 = arith.constant 1.000000e+00 : f32
    %135 = vector.broadcast %cst_67 : f32 to vector<8x1xf32>
    %136 = arith.maximumf %135, %134 : vector<8x1xf32>
    %137 = vector.broadcast %cst_68 : f32 to vector<8x1xf32>
    %138 = arith.minimumf %137, %136 : vector<8x1xf32>
    %c0_69 = arith.constant 0 : index
    %c0_70 = arith.constant 0 : index
    %c0_71 = arith.constant 0 : index
    %139 = vector.load %arg21[%c0_69, %c0_70, %c0_71] : memref<1x8x1xf32, #tpu.memory_space<vmem>>, vector<1x8x1xf32>
    %140 = vector.shape_cast %139 : vector<1x8x1xf32> to vector<8x1xf32>
    %141 = vector.shape_cast %138 : vector<8x1xf32> to vector<1x8x1xf32>
    tpu.vector_store %arg21[%c0_69, %c0_70, %c0_71], %141 {strides = array<i32>} : memref<1x8x1xf32, #tpu.memory_space<vmem>>, vector<1x8x1xf32>,
    return
  }
  func.func @transform_0(%arg0: i32) -> (i32, i32, i32) {
    %c0_i32 = arith.constant 0 : i32
    %c0_i32_0 = arith.constant 0 : i32
    %c0_i32_1 = arith.constant 0 : i32
    return %arg0, %c0_i32, %c0_i32_0 : i32, i32, i32
  }
  func.func @transform_1(%arg0: i32) -> (i32, i32, i32) {
    %c0_i32 = arith.constant 0 : i32
    %c0_i32_0 = arith.constant 0 : i32
    %c0_i32_1 = arith.constant 0 : i32
    return %arg0, %c0_i32, %c0_i32_0 : i32, i32, i32
  }
  func.func @transform_2(%arg0: i32) -> (i32, i32) {
    %c0_i32 = arith.constant 0 : i32
    %c0_i32_0 = arith.constant 0 : i32
    %c0_i32_1 = arith.constant 0 : i32
    return %c0_i32, %c0_i32_0 : i32, i32
  }
  func.func @transform_3(%arg0: i32) -> (i32, i32) {
    %c0_i32 = arith.constant 0 : i32
    %c0_i32_0 = arith.constant 0 : i32
    %c0_i32_1 = arith.constant 0 : i32
    return %c0_i32, %c0_i32_0 : i32, i32
  }
  func.func @transform_4(%arg0: i32) -> (i32, i32) {
    %c0_i32 = arith.constant 0 : i32
    %c0_i32_0 = arith.constant 0 : i32
    %c0_i32_1 = arith.constant 0 : i32
    return %c0_i32, %c0_i32_0 : i32, i32
  }
  func.func @transform_5(%arg0: i32) -> (i32, i32) {
    %c0_i32 = arith.constant 0 : i32
    %c0_i32_0 = arith.constant 0 : i32
    %c0_i32_1 = arith.constant 0 : i32
    return %c0_i32, %c0_i32_0 : i32, i32
  }
  func.func @transform_6(%arg0: i32) -> (i32, i32) {
    %c0_i32 = arith.constant 0 : i32
    %c0_i32_0 = arith.constant 0 : i32
    %c0_i32_1 = arith.constant 0 : i32
    return %c0_i32, %c0_i32_0 : i32, i32
  }
  func.func @transform_7(%arg0: i32) -> (i32, i32) {
    %c0_i32 = arith.constant 0 : i32
    %c0_i32_0 = arith.constant 0 : i32
    %c0_i32_1 = arith.constant 0 : i32
    return %c0_i32, %c0_i32_0 : i32, i32
  }
  func.func @transform_8(%arg0: i32) -> (i32, i32) {
    %c0_i32 = arith.constant 0 : i32
    %c0_i32_0 = arith.constant 0 : i32
    %c0_i32_1 = arith.constant 0 : i32
    return %c0_i32, %c0_i32_0 : i32, i32
  }
  func.func @transform_9(%arg0: i32) -> (i32, i32) {
    %c0_i32 = arith.constant 0 : i32
    %c0_i32_0 = arith.constant 0 : i32
    %c0_i32_1 = arith.constant 0 : i32
    return %c0_i32, %c0_i32_0 : i32, i32
  }
  func.func @transform_10(%arg0: i32) -> (i32, i32) {
    %c0_i32 = arith.constant 0 : i32
    %c0_i32_0 = arith.constant 0 : i32
    %c0_i32_1 = arith.constant 0 : i32
    return %c0_i32, %c0_i32_0 : i32, i32
  }
  func.func @transform_11(%arg0: i32) -> (i32, i32) {
    %c0_i32 = arith.constant 0 : i32
    %c0_i32_0 = arith.constant 0 : i32
    %c0_i32_1 = arith.constant 0 : i32
    return %c0_i32, %c0_i32_0 : i32, i32
  }
  func.func @transform_12(%arg0: i32) -> (i32, i32) {
    %c0_i32 = arith.constant 0 : i32
    %c0_i32_0 = arith.constant 0 : i32
    %c0_i32_1 = arith.constant 0 : i32
    return %c0_i32, %c0_i32_0 : i32, i32
  }
  func.func @transform_13(%arg0: i32) -> (i32, i32) {
    %c0_i32 = arith.constant 0 : i32
    %c0_i32_0 = arith.constant 0 : i32
    %c0_i32_1 = arith.constant 0 : i32
    return %c0_i32, %c0_i32_0 : i32, i32
  }
  func.func @transform_14(%arg0: i32) -> (i32, i32) {
    %c0_i32 = arith.constant 0 : i32
    %c0_i32_0 = arith.constant 0 : i32
    %c0_i32_1 = arith.constant 0 : i32
    return %c0_i32, %c0_i32_0 : i32, i32
  }
  func.func @transform_15(%arg0: i32) -> (i32, i32) {
    %c0_i32 = arith.constant 0 : i32
    %c0_i32_0 = arith.constant 0 : i32
    %c0_i32_1 = arith.constant 0 : i32
    return %c0_i32, %c0_i32_0 : i32, i32
  }
  func.func @transform_16(%arg0: i32) -> (i32, i32) {
    %c0_i32 = arith.constant 0 : i32
    %c0_i32_0 = arith.constant 0 : i32
    %c0_i32_1 = arith.constant 0 : i32
    return %c0_i32, %c0_i32_0 : i32, i32
  }
  func.func @transform_17(%arg0: i32) -> (i32, i32) {
    %c0_i32 = arith.constant 0 : i32
    %c0_i32_0 = arith.constant 0 : i32
    %c0_i32_1 = arith.constant 0 : i32
    return %c0_i32, %c0_i32_0 : i32, i32
  }
  func.func @transform_18(%arg0: i32) -> (i32, i32) {
    %c0_i32 = arith.constant 0 : i32
    %c0_i32_0 = arith.constant 0 : i32
    %c0_i32_1 = arith.constant 0 : i32
    return %c0_i32, %c0_i32_0 : i32, i32
  }
  func.func @transform_19(%arg0: i32) -> (i32, i32) {
    %c0_i32 = arith.constant 0 : i32
    %c0_i32_0 = arith.constant 0 : i32
    %c0_i32_1 = arith.constant 0 : i32
    return %c0_i32, %c0_i32_0 : i32, i32
  }
  func.func @transform_20(%arg0: i32) -> (i32, i32, i32) {
    %c0_i32 = arith.constant 0 : i32
    %c0_i32_0 = arith.constant 0 : i32
    %c0_i32_1 = arith.constant 0 : i32
    return %arg0, %c0_i32, %c0_i32_0 : i32, i32, i32
  }
}

</mosaic_0001>

<llo_original>
// kernel: tpu_custom_call.1
$region0: #{tpu_custom_call.1}
  #allocation0 [shape = 'u32[]', space=smem, size = 0x4, offset = 0x4, fixed_abs, tag = 'smem constant byte address 0x4 - core index']
  #allocation1 [shape = 'u32[144,128]{1,0:T(1,128)}', space=vmem, size = 0x12000, scoped, tag = 'internal scratch']
  #allocation2 [shape = 'f32[1,1]{1,0:T(1,128)S(1)}', space=vmem, size = 0x200, scoped, tag = 'scoped memory for tpu_custom_call.1']
  %s0 = inlined_call_operand.vmem [shape: f32[2,8,1], index: 0, kind: input, shape index: {}]
  %s1 = inlined_call_operand.vmem [shape: f32[2,8,1], index: 1, kind: input, shape index: {}]
  %s2 = inlined_call_operand.vmem [shape: f32[1,64], index: 2, kind: input, shape index: {}]
  %s3 = inlined_call_operand.hbm [shape: f32[1,64], index: 3, kind: input, shape index: {}]
  %s4 = inlined_call_operand.hbm [shape: f32[1,64], index: 4, kind: input, shape index: {}]
  %s5 = inlined_call_operand.hbm [shape: f32[1,64], index: 5, kind: input, shape index: {}]
  %s6 = inlined_call_operand.hbm [shape: bf16[64,64], index: 6, kind: input, shape index: {}]
  %s7 = inlined_call_operand.hbm [shape: bf16[64,64], index: 7, kind: input, shape index: {}]
  %s8 = inlined_call_operand.hbm [shape: bf16[64,64], index: 8, kind: input, shape index: {}]
  %s9 = inlined_call_operand.hbm [shape: f32[1,64], index: 9, kind: input, shape index: {}]
  %s10 = inlined_call_operand.hbm [shape: bf16[64,128], index: 10, kind: input, shape index: {}]
  %s11 = inlined_call_operand.hbm [shape: bf16[64,128], index: 11, kind: input, shape index: {}]
  %s12 = inlined_call_operand.hbm [shape: bf16[64,128], index: 12, kind: input, shape index: {}]
  %s13 = inlined_call_operand.hbm [shape: f32[1,128], index: 13, kind: input, shape index: {}]
  %s14 = inlined_call_operand.hbm [shape: bf16[128,128], index: 14, kind: input, shape index: {}]
  %s15 = inlined_call_operand.vmem [shape: bf16[128,128], index: 15, kind: input, shape index: {}]
  %s16 = inlined_call_operand.hbm [shape: bf16[128,128], index: 16, kind: input, shape index: {}]
  %s17 = inlined_call_operand.vmem [shape: f32[1,128], index: 17, kind: input, shape index: {}]
  %s18 = inlined_call_operand.vmem [shape: f32[1,128], index: 18, kind: input, shape index: {}]
  %s19 = inlined_call_operand.<no memory space> [shape: f32[1,1], index: 19, kind: input, shape index: {}]
  %s20 = inlined_call_operand.vmem [shape: f32[2,8,1], index: 20, kind: output, shape index: {}]
  %s21 = sld [smem:[#allocation0]]
  $region165: #{tpu_custom_call.1} parent=0
    _
  %s23 = ssub.s32 1, %s21
  %s24 = scalar_select 0, %s23, %s21
  %v25 = vstv %s19
  %26 = vst [vmem:[#allocation2] sm:$0x1] %v25
  $region1: #{tpu_custom_call.1} parent=0
    #allocation3 [shape = 'u8[512]{0}', space=vmem, size = 0x400, scoped, tag = 'input window, operand 3, single buffered']
    #allocation4 [shape = 's32[2]{0}', space=sflag, size = 0x8, scoped, tag = 'scoped memory for tpu_custom_call.1']
    #allocation5 [shape = 'u8[512]{0}', space=vmem, size = 0x400, scoped, tag = 'input window, operand 4, single buffered']
    #allocation6 [shape = 's32[1]{0}', space=sflag, size = 0x4, scoped, tag = 'scoped memory for tpu_custom_call.1']
    #allocation7 [shape = 'u8[512]{0}', space=vmem, size = 0x400, scoped, tag = 'input window, operand 5, single buffered']
    #allocation8 [shape = 'u8[16384]{0}', space=vmem, size = 0x4000, scoped, tag = 'input window, operand 6, single buffered']
    #allocation9 [shape = 's32[1]{0}', space=sflag, size = 0x4, scoped, tag = 'scoped memory for tpu_custom_call.1']
    #allocation10 [shape = 'u8[16384]{0}', space=vmem, size = 0x4000, scoped, tag = 'input window, operand 7, single buffered']
    #allocation11 [shape = 'u8[16384]{0}', space=vmem, size = 0x4000, scoped, tag = 'input window, operand 8, single buffered']
    #allocation12 [shape = 's32[1]{0}', space=sflag, size = 0x4, scoped, tag = 'scoped memory for tpu_custom_call.1']
    #allocation13 [shape = 'u8[512]{0}', space=vmem, size = 0x400, scoped, tag = 'input window, operand 9, single buffered']
    #allocation14 [shape = 'u8[16384]{0}', space=vmem, size = 0x4000, scoped, tag = 'input window, operand 10, single buffered']
    #allocation15 [shape = 's32[1]{0}', space=sflag, size = 0x4, scoped, tag = 'scoped memory for tpu_custom_call.1']
    #allocation16 [shape = 'u8[16384]{0}', space=vmem, size = 0x4000, scoped, tag = 'input window, operand 11, single buffered']
    #allocation17 [shape = 'u8[16384]{0}', space=vmem, size = 0x4000, scoped, tag = 'input window, operand 12, single buffered']
    #allocation18 [shape = 's32[1]{0}', space=sflag, size = 0x4, scoped, tag = 'scoped memory for tpu_custom_call.1']
    #allocation19 [shape = 'u8[512]{0}', space=vmem, size = 0x400, scoped, tag = 'input window, operand 13, single buffered']
    #allocation20 [shape = 'u8[32768]{0}', space=vmem, size = 0x8000, scoped, tag = 'input window, operand 14, single buffered']
    #allocation21 [shape = 's32[1]{0}', space=sflag, size = 0x4, scoped, tag = 'scoped memory for tpu_custom_call.1']
    #allocation22 [shape = 'u8[32768]{0}', space=vmem, size = 0x8000, scoped, tag = 'input window, operand 16, single buffered']
    %27 = vsyncpa [#allocation4], 0
    %28 = vsyncpa [#allocation6], 0
    %29 = vsyncpa [#allocation9], 0
    %30 = vsyncpa [#allocation12], 0
    %31 = vsyncpa [#allocation15], 0
    %32 = vsyncpa [#allocation18], 0
    %33 = vsyncpa [#allocation21], 0
    loop: start=0, step=1, limit=4
    $region2: #{tpu_custom_call.1} parent=1 // loop_pre_header
      _
    $region3: #{tpu_custom_call.1} parent=1 // loop_header
      %s35 = sphi 0, %s39
      %p36 = scmp.ge.s32.totalorder %s35, 4
      %s45 = sphi 0, %s47
      %s48 = sphi 0, %s45
      %s49 = sphi 0, %s48
      %s65 = sphi 0, %s49
      %s71 = sphi 0, %s73
      %s74 = sphi 0, %s71
      %s75 = sphi 0, %s74
      %s91 = sphi 0, %s75
      %s95 = sphi 0, %s95
      %s97 = sphi 0, %s95
      %s98 = sphi 0, %s97
      %s112 = sphi 0, %s98
      %s116 = sphi 0, %s116
      %s118 = sphi 0, %s116
      %s119 = sphi 0, %s118
      %s133 = sphi 0, %s119
      %s137 = sphi 0, %s137
      %s139 = sphi 0, %s137
      %s140 = sphi 0, %s139
      %s154 = sphi 0, %s140
      %s158 = sphi 0, %s158
      %s160 = sphi 0, %s158
      %s161 = sphi 0, %s160
      %s175 = sphi 0, %s161
      %s179 = sphi 0, %s179
      %s181 = sphi 0, %s179
      %s182 = sphi 0, %s181
      %s196 = sphi 0, %s182
      %s200 = sphi 0, %s200
      %s202 = sphi 0, %s200
      %s203 = sphi 0, %s202
      %s217 = sphi 0, %s203
      %s221 = sphi 0, %s221
      %s223 = sphi 0, %s221
      %s224 = sphi 0, %s223
      %s238 = sphi 0, %s224
      %s242 = sphi 0, %s242
      %s244 = sphi 0, %s242
      %s245 = sphi 0, %s244
      %s259 = sphi 0, %s245
      %s263 = sphi 0, %s263
      %s265 = sphi 0, %s263
      %s266 = sphi 0, %s265
      %s280 = sphi 0, %s266
      %s284 = sphi 0, %s284
      %s286 = sphi 0, %s284
      %s287 = sphi 0, %s286
      %s301 = sphi 0, %s287
      %s305 = sphi 0, %s305
      %s307 = sphi 0, %s305
      %s308 = sphi 0, %s307
      %s322 = sphi 0, %s308
      %s326 = sphi 0, %s326
      %s328 = sphi 0, %s326
      %s329 = sphi 0, %s328
      %s343 = sphi 0, %s329
      %s347 = sphi 0, %s347
      %s349 = sphi 0, %s347
      %s350 = sphi 0, %s349
      %s364 = sphi 0, %s350
      %s368 = sphi 0, %s368
      %s370 = sphi 0, %s368
      %s371 = sphi 0, %s370
      %s385 = sphi 0, %s371
      %s389 = sphi 0, %s389
      %s391 = sphi 0, %s389
      %s392 = sphi 0, %s391
      %s406 = sphi 0, %s392
      %s410 = sphi 0, %s410
      %s412 = sphi 0, %s410
      %s413 = sphi 0, %s412
      %s427 = sphi 0, %s413
      %s431 = sphi 0, %s431
      %s433 = sphi 0, %s431
      %s434 = sphi 0, %s433
      %s448 = sphi 0, %s434
      %s452 = sphi 0, %s452
      %s454 = sphi 0, %s452
      %s455 = sphi 0, %s454
      %s469 = sphi 0, %s455
      %s475 = sphi 0, %s477
      %s478 = sphi 0, %s475
      %s479 = sphi 0, %s478
      %s495 = sphi 0, %s479
    $region4: #{tpu_custom_call.1} parent=1 // loop_header_branch
      %38 = sbr.rel (%p36) target = $region8
    $region5: #{tpu_custom_call.1} parent=1 // loop_body
      %s40 = ssub.s32 %s35, 1
      %s41 = ssub.s32 %s35, 2
      %s42 = sadd.s32 %s35, 1
      %s43 = ssub.s32 %s35, %s42
      %p44 = scmp.eq.s32.totalorder %s43, 0
      %s46 = sadd.s32 %s45, 1
      %s47 = scalar_select %p44, %s45, %s46
      %p50 = pneg %p44
      %p51 = scmp.eq.s32.totalorder %s35, 1
      %p52 = por %p50, %p51
      %p53 = scmp.ne.s32.totalorder %s45, %s48
      %p54 = scmp.eq.s32.totalorder %s35, 0
      %p55 = por %p53, %p54
      %p56 = scmp.ne.s32.totalorder %s45, %s48
      %p57 = scmp.eq.s32.totalorder %s40, 1
      %p58 = por %p56, %p57
      %p59 = scmp.ne.s32.totalorder %s48, %s49
      %p60 = scmp.eq.s32.totalorder %s40, 0
      %p61 = por %p59, %p60
      %p62 = scmp.ne.s32.totalorder %s48, %s49
      %p63 = scmp.eq.s32.totalorder %s41, 1
      %p64 = por %p62, %p63
      %p66 = scmp.ne.s32.totalorder %s49, %s65
      %p67 = scmp.eq.s32.totalorder %s41, 0
      %p68 = por %p66, %p67
      %s69 = ssub.s32 %s35, %s42
      %p70 = scmp.eq.s32.totalorder %s69, 0
      %s72 = sadd.s32 %s71, 1
      %s73 = scalar_select %p70, %s71, %s72
      %p76 = pneg %p70
      %p77 = scmp.eq.s32.totalorder %s35, 1
      %p78 = por %p76, %p77
      %p79 = scmp.ne.s32.totalorder %s71, %s74
      %p80 = scmp.eq.s32.totalorder %s35, 0
      %p81 = por %p79, %p80
      %p82 = scmp.ne.s32.totalorder %s71, %s74
      %p83 = scmp.eq.s32.totalorder %s40, 1
      %p84 = por %p82, %p83
      %p85 = scmp.ne.s32.totalorder %s74, %s75
      %p86 = scmp.eq.s32.totalorder %s40, 0
      %p87 = por %p85, %p86
      %p88 = scmp.ne.s32.totalorder %s74, %s75
      %p89 = scmp.eq.s32.totalorder %s41, 1
      %p90 = por %p88, %p89
      %p92 = scmp.ne.s32.totalorder %s75, %s91
      %p93 = scmp.eq.s32.totalorder %s41, 0
      %p94 = por %p92, %p93
      %s96 = sadd.s32 %s95, 1
      %p99 = scmp.eq.s32.totalorder %s35, 1
      %p100 = scmp.ne.s32.totalorder %s95, %s97
      %p101 = scmp.eq.s32.totalorder %s35, 0
      %p102 = por %p100, %p101
      %p103 = scmp.ne.s32.totalorder %s95, %s97
      %p104 = scmp.eq.s32.totalorder %s40, 1
      %p105 = por %p103, %p104
      %p106 = scmp.ne.s32.totalorder %s97, %s98
      %p107 = scmp.eq.s32.totalorder %s40, 0
      %p108 = por %p106, %p107
      %p109 = scmp.ne.s32.totalorder %s97, %s98
      %p110 = scmp.eq.s32.totalorder %s41, 1
      %p111 = por %p109, %p110
      %p113 = scmp.ne.s32.totalorder %s98, %s112
      %p114 = scmp.eq.s32.totalorder %s41, 0
      %p115 = por %p113, %p114
      %s117 = sadd.s32 %s116, 1
      %p120 = scmp.eq.s32.totalorder %s35, 1
      %p121 = scmp.ne.s32.totalorder %s116, %s118
      %p122 = scmp.eq.s32.totalorder %s35, 0
      %p123 = por %p121, %p122
      %p124 = scmp.ne.s32.totalorder %s116, %s118
      %p125 = scmp.eq.s32.totalorder %s40, 1
      %p126 = por %p124, %p125
      %p127 = scmp.ne.s32.totalorder %s118, %s119
      %p128 = scmp.eq.s32.totalorder %s40, 0
      %p129 = por %p127, %p128
      %p130 = scmp.ne.s32.totalorder %s118, %s119
      %p131 = scmp.eq.s32.totalorder %s41, 1
      %p132 = por %p130, %p131
      %p134 = scmp.ne.s32.totalorder %s119, %s133
      %p135 = scmp.eq.s32.totalorder %s41, 0
      %p136 = por %p134, %p135
      %s138 = sadd.s32 %s137, 1
      %p141 = scmp.eq.s32.totalorder %s35, 1
      %p142 = scmp.ne.s32.totalorder %s137, %s139
      %p143 = scmp.eq.s32.totalorder %s35, 0
      %p144 = por %p142, %p143
      %p145 = scmp.ne.s32.totalorder %s137, %s139
      %p146 = scmp.eq.s32.totalorder %s40, 1
      %p147 = por %p145, %p146
      %p148 = scmp.ne.s32.totalorder %s139, %s140
      %p149 = scmp.eq.s32.totalorder %s40, 0
      %p150 = por %p148, %p149
      %p151 = scmp.ne.s32.totalorder %s139, %s140
      %p152 = scmp.eq.s32.totalorder %s41, 1
      %p153 = por %p151, %p152
      %p155 = scmp.ne.s32.totalorder %s140, %s154
      %p156 = scmp.eq.s32.totalorder %s41, 0
      %p157 = por %p155, %p156
      %s159 = sadd.s32 %s158, 1
      %p162 = scmp.eq.s32.totalorder %s35, 1
      %p163 = scmp.ne.s32.totalorder %s158, %s160
      %p164 = scmp.eq.s32.totalorder %s35, 0
      %p165 = por %p163, %p164
      %p166 = scmp.ne.s32.totalorder %s158, %s160
      %p167 = scmp.eq.s32.totalorder %s40, 1
      %p168 = por %p166, %p167
      %p169 = scmp.ne.s32.totalorder %s160, %s161
      %p170 = scmp.eq.s32.totalorder %s40, 0
      %p171 = por %p169, %p170
      %p172 = scmp.ne.s32.totalorder %s160, %s161
      %p173 = scmp.eq.s32.totalorder %s41, 1
      %p174 = por %p172, %p173
      %p176 = scmp.ne.s32.totalorder %s161, %s175
      %p177 = scmp.eq.s32.totalorder %s41, 0
      %p178 = por %p176, %p177
      %s180 = sadd.s32 %s179, 1
      %p183 = scmp.eq.s32.totalorder %s35, 1
      %p184 = scmp.ne.s32.totalorder %s179, %s181
      %p185 = scmp.eq.s32.totalorder %s35, 0
      %p186 = por %p184, %p185
      %p187 = scmp.ne.s32.totalorder %s179, %s181
      %p188 = scmp.eq.s32.totalorder %s40, 1
      %p189 = por %p187, %p188
      %p190 = scmp.ne.s32.totalorder %s181, %s182
      %p191 = scmp.eq.s32.totalorder %s40, 0
      %p192 = por %p190, %p191
      %p193 = scmp.ne.s32.totalorder %s181, %s182
      %p194 = scmp.eq.s32.totalorder %s41, 1
      %p195 = por %p193, %p194
      %p197 = scmp.ne.s32.totalorder %s182, %s196
      %p198 = scmp.eq.s32.totalorder %s41, 0
      %p199 = por %p197, %p198
      %s201 = sadd.s32 %s200, 1
      %p204 = scmp.eq.s32.totalorder %s35, 1
      %p205 = scmp.ne.s32.totalorder %s200, %s202
      %p206 = scmp.eq.s32.totalorder %s35, 0
      %p207 = por %p205, %p206
      %p208 = scmp.ne.s32.totalorder %s200, %s202
      %p209 = scmp.eq.s32.totalorder %s40, 1
      %p210 = por %p208, %p209
      %p211 = scmp.ne.s32.totalorder %s202, %s203
      %p212 = scmp.eq.s32.totalorder %s40, 0
      %p213 = por %p211, %p212
      %p214 = scmp.ne.s32.totalorder %s202, %s203
      %p215 = scmp.eq.s32.totalorder %s41, 1
      %p216 = por %p214, %p215
      %p218 = scmp.ne.s32.totalorder %s203, %s217
      %p219 = scmp.eq.s32.totalorder %s41, 0
      %p220 = por %p218, %p219
      %s222 = sadd.s32 %s221, 1
      %p225 = scmp.eq.s32.totalorder %s35, 1
      %p226 = scmp.ne.s32.totalorder %s221, %s223
      %p227 = scmp.eq.s32.totalorder %s35, 0
      %p228 = por %p226, %p227
      %p229 = scmp.ne.s32.totalorder %s221, %s223
      %p230 = scmp.eq.s32.totalorder %s40, 1
      %p231 = por %p229, %p230
      %p232 = scmp.ne.s32.totalorder %s223, %s224
      %p233 = scmp.eq.s32.totalorder %s40, 0
      %p234 = por %p232, %p233
      %p235 = scmp.ne.s32.totalorder %s223, %s224
      %p236 = scmp.eq.s32.totalorder %s41, 1
      %p237 = por %p235, %p236
      %p239 = scmp.ne.s32.totalorder %s224, %s238
      %p240 = scmp.eq.s32.totalorder %s41, 0
      %p241 = por %p239, %p240
      %s243 = sadd.s32 %s242, 1
      %p246 = scmp.eq.s32.totalorder %s35, 1
      %p247 = scmp.ne.s32.totalorder %s242, %s244
      %p248 = scmp.eq.s32.totalorder %s35, 0
      %p249 = por %p247, %p248
      %p250 = scmp.ne.s32.totalorder %s242, %s244
      %p251 = scmp.eq.s32.totalorder %s40, 1
      %p252 = por %p250, %p251
      %p253 = scmp.ne.s32.totalorder %s244, %s245
      %p254 = scmp.eq.s32.totalorder %s40, 0
      %p255 = por %p253, %p254
      %p256 = scmp.ne.s32.totalorder %s244, %s245
      %p257 = scmp.eq.s32.totalorder %s41, 1
      %p258 = por %p256, %p257
      %p260 = scmp.ne.s32.totalorder %s245, %s259
      %p261 = scmp.eq.s32.totalorder %s41, 0
      %p262 = por %p260, %p261
      %s264 = sadd.s32 %s263, 1
      %p267 = scmp.eq.s32.totalorder %s35, 1
      %p268 = scmp.ne.s32.totalorder %s263, %s265
      %p269 = scmp.eq.s32.totalorder %s35, 0
      %p270 = por %p268, %p269
      %p271 = scmp.ne.s32.totalorder %s263, %s265
      %p272 = scmp.eq.s32.totalorder %s40, 1
      %p273 = por %p271, %p272
      %p274 = scmp.ne.s32.totalorder %s265, %s266
      %p275 = scmp.eq.s32.totalorder %s40, 0
      %p276 = por %p274, %p275
      %p277 = scmp.ne.s32.totalorder %s265, %s266
      %p278 = scmp.eq.s32.totalorder %s41, 1
      %p279 = por %p277, %p278
      %p281 = scmp.ne.s32.totalorder %s266, %s280
      %p282 = scmp.eq.s32.totalorder %s41, 0
      %p283 = por %p281, %p282
      %s285 = sadd.s32 %s284, 1
      %p288 = scmp.eq.s32.totalorder %s35, 1
      %p289 = scmp.ne.s32.totalorder %s284, %s286
      %p290 = scmp.eq.s32.totalorder %s35, 0
      %p291 = por %p289, %p290
      %p292 = scmp.ne.s32.totalorder %s284, %s286
      %p293 = scmp.eq.s32.totalorder %s40, 1
      %p294 = por %p292, %p293
      %p295 = scmp.ne.s32.totalorder %s286, %s287
      %p296 = scmp.eq.s32.totalorder %s40, 0
      %p297 = por %p295, %p296
      %p298 = scmp.ne.s32.totalorder %s286, %s287
      %p299 = scmp.eq.s32.totalorder %s41, 1
      %p300 = por %p298, %p299
      %p302 = scmp.ne.s32.totalorder %s287, %s301
      %p303 = scmp.eq.s32.totalorder %s41, 0
      %p304 = por %p302, %p303
      %s306 = sadd.s32 %s305, 1
      %p309 = scmp.eq.s32.totalorder %s35, 1
      %p310 = scmp.ne.s32.totalorder %s305, %s307
      %p311 = scmp.eq.s32.totalorder %s35, 0
      %p312 = por %p310, %p311
      %p313 = scmp.ne.s32.totalorder %s305, %s307
      %p314 = scmp.eq.s32.totalorder %s40, 1
      %p315 = por %p313, %p314
      %p316 = scmp.ne.s32.totalorder %s307, %s308
      %p317 = scmp.eq.s32.totalorder %s40, 0
      %p318 = por %p316, %p317
      %p319 = scmp.ne.s32.totalorder %s307, %s308
      %p320 = scmp.eq.s32.totalorder %s41, 1
      %p321 = por %p319, %p320
      %p323 = scmp.ne.s32.totalorder %s308, %s322
      %p324 = scmp.eq.s32.totalorder %s41, 0
      %p325 = por %p323, %p324
      %s327 = sadd.s32 %s326, 1
      %p330 = scmp.eq.s32.totalorder %s35, 1
      %p331 = scmp.ne.s32.totalorder %s326, %s328
      %p332 = scmp.eq.s32.totalorder %s35, 0
      %p333 = por %p331, %p332
      %p334 = scmp.ne.s32.totalorder %s326, %s328
      %p335 = scmp.eq.s32.totalorder %s40, 1
      %p336 = por %p334, %p335
      %p337 = scmp.ne.s32.totalorder %s328, %s329
      %p338 = scmp.eq.s32.totalorder %s40, 0
      %p339 = por %p337, %p338
      %p340 = scmp.ne.s32.totalorder %s328, %s329
      %p341 = scmp.eq.s32.totalorder %s41, 1
      %p342 = por %p340, %p341
      %p344 = scmp.ne.s32.totalorder %s329, %s343
      %p345 = scmp.eq.s32.totalorder %s41, 0
      %p346 = por %p344, %p345
      %s348 = sadd.s32 %s347, 1
      %p351 = scmp.eq.s32.totalorder %s35, 1
      %p352 = scmp.ne.s32.totalorder %s347, %s349
      %p353 = scmp.eq.s32.totalorder %s35, 0
      %p354 = por %p352, %p353
      %p355 = scmp.ne.s32.totalorder %s347, %s349
      %p356 = scmp.eq.s32.totalorder %s40, 1
      %p357 = por %p355, %p356
      %p358 = scmp.ne.s32.totalorder %s349, %s350
      %p359 = scmp.eq.s32.totalorder %s40, 0
      %p360 = por %p358, %p359
      %p361 = scmp.ne.s32.totalorder %s349, %s350
      %p362 = scmp.eq.s32.totalorder %s41, 1
      %p363 = por %p361, %p362
      %p365 = scmp.ne.s32.totalorder %s350, %s364
      %p366 = scmp.eq.s32.totalorder %s41, 0
      %p367 = por %p365, %p366
      %s369 = sadd.s32 %s368, 1
      %p372 = scmp.eq.s32.totalorder %s35, 1
      %p373 = scmp.ne.s32.totalorder %s368, %s370
      %p374 = scmp.eq.s32.totalorder %s35, 0
      %p375 = por %p373, %p374
      %p376 = scmp.ne.s32.totalorder %s368, %s370
      %p377 = scmp.eq.s32.totalorder %s40, 1
      %p378 = por %p376, %p377
      %p379 = scmp.ne.s32.totalorder %s370, %s371
      %p380 = scmp.eq.s32.totalorder %s40, 0
      %p381 = por %p379, %p380
      %p382 = scmp.ne.s32.totalorder %s370, %s371
      %p383 = scmp.eq.s32.totalorder %s41, 1
      %p384 = por %p382, %p383
      %p386 = scmp.ne.s32.totalorder %s371, %s385
      %p387 = scmp.eq.s32.totalorder %s41, 0
      %p388 = por %p386, %p387
      %s390 = sadd.s32 %s389, 1
      %p393 = scmp.eq.s32.totalorder %s35, 1
      %p394 = scmp.ne.s32.totalorder %s389, %s391
      %p395 = scmp.eq.s32.totalorder %s35, 0
      %p396 = por %p394, %p395
      %p397 = scmp.ne.s32.totalorder %s389, %s391
      %p398 = scmp.eq.s32.totalorder %s40, 1
      %p399 = por %p397, %p398
      %p400 = scmp.ne.s32.totalorder %s391, %s392
      %p401 = scmp.eq.s32.totalorder %s40, 0
      %p402 = por %p400, %p401
      %p403 = scmp.ne.s32.totalorder %s391, %s392
      %p404 = scmp.eq.s32.totalorder %s41, 1
      %p405 = por %p403, %p404
      %p407 = scmp.ne.s32.totalorder %s392, %s406
      %p408 = scmp.eq.s32.totalorder %s41, 0
      %p409 = por %p407, %p408
      %s411 = sadd.s32 %s410, 1
      %p414 = scmp.eq.s32.totalorder %s35, 1
      %p415 = scmp.ne.s32.totalorder %s410, %s412
      %p416 = scmp.eq.s32.totalorder %s35, 0
      %p417 = por %p415, %p416
      %p418 = scmp.ne.s32.totalorder %s410, %s412
      %p419 = scmp.eq.s32.totalorder %s40, 1
      %p420 = por %p418, %p419
      %p421 = scmp.ne.s32.totalorder %s412, %s413
      %p422 = scmp.eq.s32.totalorder %s40, 0
      %p423 = por %p421, %p422
      %p424 = scmp.ne.s32.totalorder %s412, %s413
      %p425 = scmp.eq.s32.totalorder %s41, 1
      %p426 = por %p424, %p425
      %p428 = scmp.ne.s32.totalorder %s413, %s427
      %p429 = scmp.eq.s32.totalorder %s41, 0
      %p430 = por %p428, %p429
      %s432 = sadd.s32 %s431, 1
      %p435 = scmp.eq.s32.totalorder %s35, 1
      %p436 = scmp.ne.s32.totalorder %s431, %s433
      %p437 = scmp.eq.s32.totalorder %s35, 0
      %p438 = por %p436, %p437
      %p439 = scmp.ne.s32.totalorder %s431, %s433
      %p440 = scmp.eq.s32.totalorder %s40, 1
      %p441 = por %p439, %p440
      %p442 = scmp.ne.s32.totalorder %s433, %s434
      %p443 = scmp.eq.s32.totalorder %s40, 0
      %p444 = por %p442, %p443
      %p445 = scmp.ne.s32.totalorder %s433, %s434
      %p446 = scmp.eq.s32.totalorder %s41, 1
      %p447 = por %p445, %p446
      %p449 = scmp.ne.s32.totalorder %s434, %s448
      %p450 = scmp.eq.s32.totalorder %s41, 0
      %p451 = por %p449, %p450
      %s453 = sadd.s32 %s452, 1
      %p456 = scmp.eq.s32.totalorder %s35, 1
      %p457 = scmp.ne.s32.totalorder %s452, %s454
      %p458 = scmp.eq.s32.totalorder %s35, 0
      %p459 = por %p457, %p458
      %p460 = scmp.ne.s32.totalorder %s452, %s454
      %p461 = scmp.eq.s32.totalorder %s40, 1
      %p462 = por %p460, %p461
      %p463 = scmp.ne.s32.totalorder %s454, %s455
      %p464 = scmp.eq.s32.totalorder %s40, 0
      %p465 = por %p463, %p464
      %p466 = scmp.ne.s32.totalorder %s454, %s455
      %p467 = scmp.eq.s32.totalorder %s41, 1
      %p468 = por %p466, %p467
      %p470 = scmp.ne.s32.totalorder %s455, %s469
      %p471 = scmp.eq.s32.totalorder %s41, 0
      %p472 = por %p470, %p471
      %s473 = ssub.s32 %s35, %s42
      %p474 = scmp.eq.s32.totalorder %s473, 0
      %s476 = sadd.s32 %s475, 1
      %s477 = scalar_select %p474, %s475, %s476
      %p480 = pneg %p474
      %p481 = scmp.eq.s32.totalorder %s35, 1
      %p482 = por %p480, %p481
      %p483 = scmp.ne.s32.totalorder %s475, %s478
      %p484 = scmp.eq.s32.totalorder %s35, 0
      %p485 = por %p483, %p484
      %p486 = scmp.ne.s32.totalorder %s475, %s478
      %p487 = scmp.eq.s32.totalorder %s40, 1
      %p488 = por %p486, %p487
      %p489 = scmp.ne.s32.totalorder %s478, %s479
      %p490 = scmp.eq.s32.totalorder %s40, 0
      %p491 = por %p489, %p490
      %p492 = scmp.ne.s32.totalorder %s478, %s479
      %p493 = scmp.eq.s32.totalorder %s41, 1
      %p494 = por %p492, %p493
      %p496 = scmp.ne.s32.totalorder %s479, %s495
      %p497 = scmp.eq.s32.totalorder %s41, 0
      %p498 = por %p496, %p497
      %p499 = scmp.le.s32.totalorder 1, %s35
      %p500 = scmp.lt.s32.totalorder %s35, 3
      %p501 = pnand %p499, %p500
      %p502 = pneg %p501
      // Predicated region
      $region9: #{tpu_custom_call.1} parent=5 // pred_check
        _
      $region10: #{tpu_custom_call.1} parent=5 // pred_check_branch
        %504 = sbr.rel (%p501) target = $region12
      $region11: #{tpu_custom_call.1} parent=5 // pred_region
        %s505 = ssub.s32 %s35, 1
        // Predicated region
        $region13: #{tpu_custom_call.1} parent=11 // pred_check
          %p506 = pneg %p108
        $region14: #{tpu_custom_call.1} parent=11 // pred_check_branch
          %508 = sbr.rel (%p506) target = $region16
        $region15: #{tpu_custom_call.1} parent=11 // pred_region
          _
        $region16: #{tpu_custom_call.1} parent=11 // pred_fallthru
          _
        // Predicated region
        $region17: #{tpu_custom_call.1} parent=11 // pred_check
          %p509 = pneg %p129
        $region18: #{tpu_custom_call.1} parent=11 // pred_check_branch
          %511 = sbr.rel (%p509) target = $region20
        $region19: #{tpu_custom_call.1} parent=11 // pred_region
          %s513 = ssub.s32 16, 16
          %514 = vsyncadd [#allocation4], %s513
          %s516 = sshll.u32 [#allocation3], 4
          %s517 = int_to_ptr.vmem [resolvable:$true] %s516
          %519 = dma.hbm_to_vmem [thread:$0]  %s3, 16, %s517, [#allocation4]
        $region20: #{tpu_custom_call.1} parent=11 // pred_fallthru
          _
        // Predicated region
        $region21: #{tpu_custom_call.1} parent=11 // pred_check
          %p520 = pneg %p150
        $region22: #{tpu_custom_call.1} parent=11 // pred_check_branch
          %522 = sbr.rel (%p520) target = $region24
        $region23: #{tpu_custom_call.1} parent=11 // pred_region
          %s524 = ssub.s32 16, 16
          %525 = vsyncadd [#allocation6], %s524
          %s527 = sshll.u32 [#allocation5], 4
          %s528 = int_to_ptr.vmem [resolvable:$true] %s527
          %530 = dma.hbm_to_vmem [thread:$0]  %s4, 16, %s528, [#allocation6]
        $region24: #{tpu_custom_call.1} parent=11 // pred_fallthru
          _
        // Predicated region
        $region25: #{tpu_custom_call.1} parent=11 // pred_check
          %p531 = pneg %p171
        $region26: #{tpu_custom_call.1} parent=11 // pred_check_branch
          %533 = sbr.rel (%p531) target = $region28
        $region27: #{tpu_custom_call.1} parent=11 // pred_region
          %s535 = ssub.s32 16, 16
          %536 = vsyncadd [#allocation6], %s535
          %s538 = sshll.u32 [#allocation7], 4
          %s539 = int_to_ptr.vmem [resolvable:$true] %s538
          %541 = dma.hbm_to_vmem [thread:$0]  %s5, 16, %s539, [#allocation6]
        $region28: #{tpu_custom_call.1} parent=11 // pred_fallthru
          _
        // Predicated region
        $region29: #{tpu_custom_call.1} parent=11 // pred_check
          %p542 = pneg %p192
        $region30: #{tpu_custom_call.1} parent=11 // pred_check_branch
          %544 = sbr.rel (%p542) target = $region32
        $region31: #{tpu_custom_call.1} parent=11 // pred_region
          %s546 = ssub.s32 512, 512
          %547 = vsyncadd [#allocation9], %s546
          %s548 = sshll.u32 [#allocation8], 4
          %s549 = int_to_ptr.vmem [resolvable:$true] %s548
          %554 = dma.hbm_to_vmem [thread:$0]  %s6, 512, %s549, [#allocation9], 64, 64, 4
        $region32: #{tpu_custom_call.1} parent=11 // pred_fallthru
          _
        // Predicated region
        $region33: #{tpu_custom_call.1} parent=11 // pred_check
          %p555 = pneg %p213
        $region34: #{tpu_custom_call.1} parent=11 // pred_check_branch
          %557 = sbr.rel (%p555) target = $region36
        $region35: #{tpu_custom_call.1} parent=11 // pred_region
          %s559 = ssub.s32 512, 512
          %560 = vsyncadd [#allocation9], %s559
          %s561 = sshll.u32 [#allocation10], 4
          %s562 = int_to_ptr.vmem [resolvable:$true] %s561
          %567 = dma.hbm_to_vmem [thread:$0]  %s7, 512, %s562, [#allocation9], 64, 64, 4
        $region36: #{tpu_custom_call.1} parent=11 // pred_fallthru
          _
        // Predicated region
        $region37: #{tpu_custom_call.1} parent=11 // pred_check
          %p568 = pneg %p234
        $region38: #{tpu_custom_call.1} parent=11 // pred_check_branch
          %570 = sbr.rel (%p568) target = $region40
        $region39: #{tpu_custom_call.1} parent=11 // pred_region
          %s572 = ssub.s32 512, 512
          %573 = vsyncadd [#allocation12], %s572
          %s574 = sshll.u32 [#allocation11], 4
          %s575 = int_to_ptr.vmem [resolvable:$true] %s574
          %580 = dma.hbm_to_vmem [thread:$0]  %s8, 512, %s575, [#allocation12], 64, 64, 4
        $region40: #{tpu_custom_call.1} parent=11 // pred_fallthru
          _
        // Predicated region
        $region41: #{tpu_custom_call.1} parent=11 // pred_check
          %p581 = pneg %p255
        $region42: #{tpu_custom_call.1} parent=11 // pred_check_branch
          %583 = sbr.rel (%p581) target = $region44
        $region43: #{tpu_custom_call.1} parent=11 // pred_region
          %s585 = ssub.s32 16, 16
          %586 = vsyncadd [#allocation12], %s585
          %s588 = sshll.u32 [#allocation13], 4
          %s589 = int_to_ptr.vmem [resolvable:$true] %s588
          %591 = dma.hbm_to_vmem [thread:$0]  %s9, 16, %s589, [#allocation12]
        $region44: #{tpu_custom_call.1} parent=11 // pred_fallthru
          _
        // Predicated region
        $region45: #{tpu_custom_call.1} parent=11 // pred_check
          %p592 = pneg %p276
        $region46: #{tpu_custom_call.1} parent=11 // pred_check_branch
          %594 = sbr.rel (%p592) target = $region48
        $region47: #{tpu_custom_call.1} parent=11 // pred_region
          %s596 = ssub.s32 512, 512
          %597 = vsyncadd [#allocation15], %s596
          %s598 = sshll.u32 [#allocation14], 4
          %s599 = int_to_ptr.vmem [resolvable:$true] %s598
          %604 = dma.hbm_to_vmem [thread:$0]  %s10, 512, %s599, [#allocation15], 64, 64, 4
        $region48: #{tpu_custom_call.1} parent=11 // pred_fallthru
          _
        // Predicated region
        $region49: #{tpu_custom_call.1} parent=11 // pred_check
          %p605 = pneg %p297
        $region50: #{tpu_custom_call.1} parent=11 // pred_check_branch
          %607 = sbr.rel (%p605) target = $region52
        $region51: #{tpu_custom_call.1} parent=11 // pred_region
          %s609 = ssub.s32 512, 512
          %610 = vsyncadd [#allocation15], %s609
          %s611 = sshll.u32 [#allocation16], 4
          %s612 = int_to_ptr.vmem [resolvable:$true] %s611
          %617 = dma.hbm_to_vmem [thread:$0]  %s11, 512, %s612, [#allocation15], 64, 64, 4
        $region52: #{tpu_custom_call.1} parent=11 // pred_fallthru
          _
        // Predicated region
        $region53: #{tpu_custom_call.1} parent=11 // pred_check
          %p618 = pneg %p318
        $region54: #{tpu_custom_call.1} parent=11 // pred_check_branch
          %620 = sbr.rel (%p618) target = $region56
        $region55: #{tpu_custom_call.1} parent=11 // pred_region
          %s622 = ssub.s32 512, 512
          %623 = vsyncadd [#allocation18], %s622
          %s624 = sshll.u32 [#allocation17], 4
          %s625 = int_to_ptr.vmem [resolvable:$true] %s624
          %630 = dma.hbm_to_vmem [thread:$0]  %s12, 512, %s625, [#allocation18], 64, 64, 4
        $region56: #{tpu_custom_call.1} parent=11 // pred_fallthru
          _
        // Predicated region
        $region57: #{tpu_custom_call.1} parent=11 // pred_check
          %p631 = pneg %p339
        $region58: #{tpu_custom_call.1} parent=11 // pred_check_branch
          %633 = sbr.rel (%p631) target = $region60
        $region59: #{tpu_custom_call.1} parent=11 // pred_region
          %s635 = ssub.s32 16, 16
          %636 = vsyncadd [#allocation18], %s635
          %s638 = sshll.u32 [#allocation19], 4
          %s639 = int_to_ptr.vmem [resolvable:$true] %s638
          %641 = dma.hbm_to_vmem [thread:$0]  %s13, 16, %s639, [#allocation18]
        $region60: #{tpu_custom_call.1} parent=11 // pred_fallthru
          _
        // Predicated region
        $region61: #{tpu_custom_call.1} parent=11 // pred_check
          %p642 = pneg %p360
        $region62: #{tpu_custom_call.1} parent=11 // pred_check_branch
          %644 = sbr.rel (%p642) target = $region64
        $region63: #{tpu_custom_call.1} parent=11 // pred_region
          %s646 = ssub.s32 1024, 1024
          %647 = vsyncadd [#allocation21], %s646
          %s648 = sshll.u32 [#allocation20], 4
          %s649 = int_to_ptr.vmem [resolvable:$true] %s648
          %654 = dma.hbm_to_vmem [thread:$0]  %s14, 1024, %s649, [#allocation21], 64, 64, 4
        $region64: #{tpu_custom_call.1} parent=11 // pred_fallthru
          _
        // Predicated region
        $region65: #{tpu_custom_call.1} parent=11 // pred_check
          %p655 = pneg %p381
        $region66: #{tpu_custom_call.1} parent=11 // pred_check_branch
          %657 = sbr.rel (%p655) target = $region68
        $region67: #{tpu_custom_call.1} parent=11 // pred_region
          _
        $region68: #{tpu_custom_call.1} parent=11 // pred_fallthru
          _
        // Predicated region
        $region69: #{tpu_custom_call.1} parent=11 // pred_check
          %p658 = pneg %p402
        $region70: #{tpu_custom_call.1} parent=11 // pred_check_branch
          %660 = sbr.rel (%p658) target = $region72
        $region71: #{tpu_custom_call.1} parent=11 // pred_region
          %s662 = ssub.s32 1024, 1024
          %663 = vsyncadd [#allocation21], %s662
          %s664 = sshll.u32 [#allocation22], 4
          %s665 = int_to_ptr.vmem [resolvable:$true] %s664
          %670 = dma.hbm_to_vmem [thread:$0]  %s16, 1024, %s665, [#allocation21], 64, 64, 4
        $region72: #{tpu_custom_call.1} parent=11 // pred_fallthru
          _
        // Predicated region
        $region73: #{tpu_custom_call.1} parent=11 // pred_check
          %p671 = pneg %p423
        $region74: #{tpu_custom_call.1} parent=11 // pred_check_branch
          %673 = sbr.rel (%p671) target = $region76
        $region75: #{tpu_custom_call.1} parent=11 // pred_region
          _
        $region76: #{tpu_custom_call.1} parent=11 // pred_fallthru
          _
        // Predicated region
        $region77: #{tpu_custom_call.1} parent=11 // pred_check
          %p674 = pneg %p444
        $region78: #{tpu_custom_call.1} parent=11 // pred_check_branch
          %676 = sbr.rel (%p674) target = $region80
        $region79: #{tpu_custom_call.1} parent=11 // pred_region
          _
        $region80: #{tpu_custom_call.1} parent=11 // pred_fallthru
          _
        // Predicated region
        $region81: #{tpu_custom_call.1} parent=11 // pred_check
          %p677 = pneg %p465
        $region82: #{tpu_custom_call.1} parent=11 // pred_check_branch
          %679 = sbr.rel (%p677) target = $region84
        $region83: #{tpu_custom_call.1} parent=11 // pred_region
          _
        $region84: #{tpu_custom_call.1} parent=11 // pred_fallthru
          _
      $region12: #{tpu_custom_call.1} parent=5 // pred_fallthru
        _
      %p680 = scmp.lt.s32.totalorder %s35, 2
      // Predicated region
      $region85: #{tpu_custom_call.1} parent=5 // pred_check
        %p681 = pneg %p680
      $region86: #{tpu_custom_call.1} parent=5 // pred_check_branch
        %683 = sbr.rel (%p681) target = $region88
      $region87: #{tpu_custom_call.1} parent=5 // pred_region
        // Predicated region
        $region89: #{tpu_custom_call.1} parent=87 // pred_check
          %p684 = pneg %p55
        $region90: #{tpu_custom_call.1} parent=87 // pred_check_branch
          %686 = sbr.rel (%p684) target = $region92
        $region91: #{tpu_custom_call.1} parent=87 // pred_region
          %p687 = scmp.lt.s32.totalorder %s35, 1
          %s688 = scalar_select %p687, %s35, 1
          %s689 = smul.addr %s688, 8
          %s690 = scalar_lea.vmem %s0, %s689
        $region92: #{tpu_custom_call.1} parent=87 // pred_fallthru
          _
        // Predicated region
        $region93: #{tpu_custom_call.1} parent=87 // pred_check
          %p691 = pneg %p81
        $region94: #{tpu_custom_call.1} parent=87 // pred_check_branch
          %693 = sbr.rel (%p691) target = $region96
        $region95: #{tpu_custom_call.1} parent=87 // pred_region
          %p694 = scmp.lt.s32.totalorder %s35, 1
          %s695 = scalar_select %p694, %s35, 1
          %s696 = smul.addr %s695, 8
          %s697 = scalar_lea.vmem %s1, %s696
        $region96: #{tpu_custom_call.1} parent=87 // pred_fallthru
          _
      $region88: #{tpu_custom_call.1} parent=5 // pred_fallthru
        _
      %p698 = scmp.le.s32.totalorder 1, %s35
      %p699 = scmp.lt.s32.totalorder %s35, 3
      %p700 = pnand %p698, %p699
      %p701 = pneg %p700
      // Predicated region
      $region97: #{tpu_custom_call.1} parent=5 // pred_check
        _
      $region98: #{tpu_custom_call.1} parent=5 // pred_check_branch
        %703 = sbr.rel (%p700) target = $region100
      $region99: #{tpu_custom_call.1} parent=5 // pred_region
        %s704 = ssub.s32 %s35, 1
        // Predicated region
        $region101: #{tpu_custom_call.1} parent=99 // pred_check
          %p705 = pneg %p129
        $region102: #{tpu_custom_call.1} parent=99 // pred_check_branch
          %707 = sbr.rel (%p705) target = $region104
        $region103: #{tpu_custom_call.1} parent=99 // pred_region
          %708 = dma.done [#allocation4], 16
        $region104: #{tpu_custom_call.1} parent=99 // pred_fallthru
          _
        // Predicated region
        $region105: #{tpu_custom_call.1} parent=99 // pred_check
          %p709 = pneg %p150
        $region106: #{tpu_custom_call.1} parent=99 // pred_check_branch
          %711 = sbr.rel (%p709) target = $region108
        $region107: #{tpu_custom_call.1} parent=99 // pred_region
          %712 = dma.done [#allocation6], 16
        $region108: #{tpu_custom_call.1} parent=99 // pred_fallthru
          _
        // Predicated region
        $region109: #{tpu_custom_call.1} parent=99 // pred_check
          %p713 = pneg %p171
        $region110: #{tpu_custom_call.1} parent=99 // pred_check_branch
          %715 = sbr.rel (%p713) target = $region112
        $region111: #{tpu_custom_call.1} parent=99 // pred_region
          %716 = dma.done [#allocation6], 16
        $region112: #{tpu_custom_call.1} parent=99 // pred_fallthru
          _
        // Predicated region
        $region113: #{tpu_custom_call.1} parent=99 // pred_check
          %p717 = pneg %p192
        $region114: #{tpu_custom_call.1} parent=99 // pred_check_branch
          %719 = sbr.rel (%p717) target = $region116
        $region115: #{tpu_custom_call.1} parent=99 // pred_region
          %720 = dma.done [#allocation9], 512
        $region116: #{tpu_custom_call.1} parent=99 // pred_fallthru
          _
        // Predicated region
        $region117: #{tpu_custom_call.1} parent=99 // pred_check
          %p721 = pneg %p213
        $region118: #{tpu_custom_call.1} parent=99 // pred_check_branch
          %723 = sbr.rel (%p721) target = $region120
        $region119: #{tpu_custom_call.1} parent=99 // pred_region
          %724 = dma.done [#allocation9], 512
        $region120: #{tpu_custom_call.1} parent=99 // pred_fallthru
          _
        // Predicated region
        $region121: #{tpu_custom_call.1} parent=99 // pred_check
          %p725 = pneg %p234
        $region122: #{tpu_custom_call.1} parent=99 // pred_check_branch
          %727 = sbr.rel (%p725) target = $region124
        $region123: #{tpu_custom_call.1} parent=99 // pred_region
          %728 = dma.done [#allocation12], 512
        $region124: #{tpu_custom_call.1} parent=99 // pred_fallthru
          _
        // Predicated region
        $region125: #{tpu_custom_call.1} parent=99 // pred_check
          %p729 = pneg %p255
        $region126: #{tpu_custom_call.1} parent=99 // pred_check_branch
          %731 = sbr.rel (%p729) target = $region128
        $region127: #{tpu_custom_call.1} parent=99 // pred_region
          %732 = dma.done [#allocation12], 16
        $region128: #{tpu_custom_call.1} parent=99 // pred_fallthru
          _
        // Predicated region
        $region129: #{tpu_custom_call.1} parent=99 // pred_check
          %p733 = pneg %p276
        $region130: #{tpu_custom_call.1} parent=99 // pred_check_branch
          %735 = sbr.rel (%p733) target = $region132
        $region131: #{tpu_custom_call.1} parent=99 // pred_region
          %736 = dma.done [#allocation15], 512
        $region132: #{tpu_custom_call.1} parent=99 // pred_fallthru
          _
        // Predicated region
        $region133: #{tpu_custom_call.1} parent=99 // pred_check
          %p737 = pneg %p297
        $region134: #{tpu_custom_call.1} parent=99 // pred_check_branch
          %739 = sbr.rel (%p737) target = $region136
        $region135: #{tpu_custom_call.1} parent=99 // pred_region
          %740 = dma.done [#allocation15], 512
        $region136: #{tpu_custom_call.1} parent=99 // pred_fallthru
          _
        // Predicated region
        $region137: #{tpu_custom_call.1} parent=99 // pred_check
          %p741 = pneg %p318
        $region138: #{tpu_custom_call.1} parent=99 // pred_check_branch
          %743 = sbr.rel (%p741) target = $region140
        $region139: #{tpu_custom_call.1} parent=99 // pred_region
          %744 = dma.done [#allocation18], 512
        $region140: #{tpu_custom_call.1} parent=99 // pred_fallthru
          _
        // Predicated region
        $region141: #{tpu_custom_call.1} parent=99 // pred_check
          %p745 = pneg %p339
        $region142: #{tpu_custom_call.1} parent=99 // pred_check_branch
          %747 = sbr.rel (%p745) target = $region144
        $region143: #{tpu_custom_call.1} parent=99 // pred_region
          %748 = dma.done [#allocation18], 16
        $region144: #{tpu_custom_call.1} parent=99 // pred_fallthru
          _
        // Predicated region
        $region145: #{tpu_custom_call.1} parent=99 // pred_check
          %p749 = pneg %p360
        $region146: #{tpu_custom_call.1} parent=99 // pred_check_branch
          %751 = sbr.rel (%p749) target = $region148
        $region147: #{tpu_custom_call.1} parent=99 // pred_region
          %752 = dma.done [#allocation21], 1024
        $region148: #{tpu_custom_call.1} parent=99 // pred_fallthru
          _
        // Predicated region
        $region149: #{tpu_custom_call.1} parent=99 // pred_check
          %p753 = pneg %p402
        $region150: #{tpu_custom_call.1} parent=99 // pred_check_branch
          %755 = sbr.rel (%p753) target = $region152
        $region151: #{tpu_custom_call.1} parent=99 // pred_region
          %756 = dma.done [#allocation21], 1024
        $region152: #{tpu_custom_call.1} parent=99 // pred_fallthru
          _
        %p757 = scmp.lt.s32.totalorder %s40, 1
        %s758 = scalar_select %p757, %s40, 1
        %s759 = smul.addr %s758, 8
        %s760 = scalar_lea.vmem %s0, %s759
        %p761 = pneg %p61
        %p762 = pneg %p58
        %p763 = scmp.lt.s32.totalorder %s40, 1
        %s764 = scalar_select %p763, %s40, 1
        %s765 = smul.addr %s764, 8
        %s766 = scalar_lea.vmem %s1, %s765
        %p767 = pneg %p87
        %p768 = pneg %p84
        %p769 = pneg %p108
        %p770 = pneg %p105
        %p771 = pneg %p129
        %p772 = pneg %p126
        %p773 = pneg %p150
        %p774 = pneg %p147
        %p775 = pneg %p171
        %p776 = pneg %p168
        %p777 = pneg %p192
        %p778 = pneg %p189
        %p779 = pneg %p213
        %p780 = pneg %p210
        %p781 = pneg %p234
        %p782 = pneg %p231
        %p783 = pneg %p255
        %p784 = pneg %p252
        %p785 = pneg %p276
        %p786 = pneg %p273
        %p787 = pneg %p297
        %p788 = pneg %p294
        %p789 = pneg %p318
        %p790 = pneg %p315
        %p791 = pneg %p339
        %p792 = pneg %p336
        %p793 = pneg %p360
        %p794 = pneg %p357
        %p795 = pneg %p381
        %p796 = pneg %p378
        %p797 = pneg %p402
        %p798 = pneg %p399
        %p799 = pneg %p423
        %p800 = pneg %p420
        %p801 = pneg %p444
        %p802 = pneg %p441
        %p803 = pneg %p465
        %p804 = pneg %p462
        %p805 = pneg %p491
        %p806 = pneg %p488
        %p807 = scmp.lt.s32.totalorder %s40, 1
        %s808 = scalar_select %p807, %s40, 1
        %s809 = smul.addr %s808, 8
        %s810 = scalar_lea.vmem %s20, %s809
        %p811 = scmp.lt.s32.totalorder %s40, 1
        %s812 = scalar_select %p811, %s40, 1
        %s813 = smul.addr %s812, 8
        %s814 = scalar_lea.vmem %s0, %s813
        %p815 = scmp.lt.s32.totalorder %s40, 1
        %s816 = scalar_select %p815, %s40, 1
        %s817 = smul.addr %s816, 8
        %s818 = scalar_lea.vmem %s1, %s817
        %p819 = scmp.lt.s32.totalorder %s40, 1
        %s820 = scalar_select %p819, %s40, 1
        %s821 = smul.addr %s820, 8
        %s822 = scalar_lea.vmem %s20, %s821
        %v824 = vld [vmem:[%s814] sm:$0xff]
        %v825 = vld [vmem:[%s818] sm:$0xff]
        %v826 = vld [vmem:[%s2] sm:$0x1]
        %v827 = vld [vmem:[#allocation3] sm:$0x1]
        %v828 = vld [vmem:[#allocation5] sm:$0x1]
        %v829 = vld [vmem:[#allocation7] sm:$0x1]
        %v831 = vrot.slane %v825, 7
        %vm833 = vcmask 1040384
        %v834 = vsel %vm833, %v824, %v831
        %v836 = vrot.slane %v824, 1
        %vm838 = vcmask 1046528
        %v839 = vsel %vm838, %v836, %v825
        %841 = vset.pattern.permute.xlu0 0
        %842 = vperm.xlu0 %841, %v834
        %v843 = vpop.permute.xlu0 %842
        %v846 = vlaneseq
        %v847 = vshrl.u32 %v846, 7
        %v848 = vsub.s32 0, %v847
        %v849 = vrot.slane %v826, %v848
        %v851 = vmul.f32 %v843, %v849
        %852 = vset.pattern.permute.xlu0 0
        %853 = vperm.xlu0 %852, %v824
        %v854 = vpop.permute.xlu0 %853
        %v857 = vlaneseq
        %v858 = vshrl.u32 %v857, 7
        %v859 = vsub.s32 0, %v858
        %v860 = vrot.slane %v827, %v859
        %v862 = vmul.f32 %v854, %v860
        %v863 = vadd.f32 %v851, %v862
        %864 = vset.pattern.permute.xlu0 0
        %865 = vperm.xlu0 %864, %v825
        %v866 = vpop.permute.xlu0 %865
        %v869 = vlaneseq
        %v870 = vshrl.u32 %v869, 7
        %v871 = vsub.s32 0, %v870
        %v872 = vrot.slane %v828, %v871
        %v874 = vmul.f32 %v866, %v872
        %v875 = vadd.f32 %v863, %v874
        %v877 = vlaneseq
        %v878 = vshrl.u32 %v877, 7
        %v879 = vsub.s32 0, %v878
        %v880 = vrot.slane %v829, %v879
        %v882 = vadd.f32 %v875, %v880
        %v883 = vmax.f32 %v882, 0.0
        %v884 = vmul.f32 %v854, %v849
        %v885 = vmul.f32 %v866, %v860
        %v886 = vadd.f32 %v884, %v885
        %888 = vset.pattern.permute.xlu0 0
        %889 = vperm.xlu0 %888, %v839
        %v890 = vpop.permute.xlu0 %889
        %v892 = vmul.f32 %v890, %v872
        %v893 = vadd.f32 %v886, %v892
        %v894 = vadd.f32 %v893, %v880
        %v895 = vmax.f32 %v894, 0.0
        %v897 = vrot.slane %v895, 7
        %v899 = vsel %vm833, %v883, %v897
        %v901 = vrot.slane %v883, 1
        %v903 = vsel %vm838, %v901, %v895
        %v904 = vpack.c.bf16 %v899, %v899
        %v905 = vld [vmem:[#allocation8] sm:$0xf]
        %v906 = vld [vmem:[#allocation8 + $0x4] sm:$0xf]
        %v907 = vld [vmem:[#allocation8 + $0x8] sm:$0xf]
        %v908 = vld [vmem:[#allocation8 + $0xc] sm:$0xf]
        %v909 = vld [vmem:[#allocation8 + $0x10] sm:$0xf]
        %v910 = vld [vmem:[#allocation8 + $0x14] sm:$0xf]
        %v911 = vld [vmem:[#allocation8 + $0x18] sm:$0xf]
        %v912 = vld [vmem:[#allocation8 + $0x1c] sm:$0xf]
        %v913 = vpack.c.bf16 %v883, %v883
        %v914 = vld [vmem:[#allocation10] sm:$0xf]
        %v915 = vld [vmem:[#allocation10 + $0x4] sm:$0xf]
        %v916 = vld [vmem:[#allocation10 + $0x8] sm:$0xf]
        %v917 = vld [vmem:[#allocation10 + $0xc] sm:$0xf]
        %v918 = vld [vmem:[#allocation10 + $0x10] sm:$0xf]
        %v919 = vld [vmem:[#allocation10 + $0x14] sm:$0xf]
        %v920 = vld [vmem:[#allocation10 + $0x18] sm:$0xf]
        %v921 = vld [vmem:[#allocation10 + $0x1c] sm:$0xf]
        %v930 = vunpack.c.l.b16 %v914
        %v931 = vunpack.c.l.b16 %v915
        %v932 = vunpack.c.l.b16 %v916
        %v933 = vunpack.c.l.b16 %v917
        %v934 = vunpack.c.l.b16 %v918
        %v935 = vunpack.c.l.b16 %v919
        %v936 = vunpack.c.l.b16 %v920
        %v937 = vunpack.c.l.b16 %v921
        %v938 = vpack.c.b16 %v931, %v930
        %v939 = vpack.c.b16 %v933, %v932
        %v940 = vpack.c.b16 %v935, %v934
        %v941 = vpack.c.b16 %v937, %v936
        %vm946 = vcmask 523264
        %v948 = vsel %vm946, %v913, 0
        %950 = vmatprep.subr.bf16.mxu0 0
        %951 = vmatpush1.bf16.msra.mxu0 0
        %952 = vmatprep.subr.bf16.mxu0 0
        %953 = vmatpush1.bf16.msra.mxu0 0
        %954 = vmatprep.subr.bf16.mxu0 0
        %955 = vmatpush1.bf16.msra.mxu0 0
        %956 = vmatprep.subr.bf16.mxu0 0
        %957 = vmatpush1.bf16.msra.mxu0 0
        %958 = vmatprep.subr.bf16.mxu0 0
        %959 = vmatpush1.bf16.msra.mxu0 %v941
        %960 = vmatprep.subr.bf16.mxu0 0
        %961 = vmatpush1.bf16.msra.mxu0 %v940
        %962 = vmatprep.subr.bf16.mxu0 0
        %963 = vmatpush1.bf16.msra.mxu0 %v939
        %964 = vmatprep.subr.bf16.mxu0 0
        %965 = vmatpush1.bf16.msra.mxu0 %v938
        %966 = vmatprep.subr.bf16.mxu0 0
        %967 = vmatpush2.bf16.msra.mxu0 0
        %968 = vmatprep.subr.bf16.mxu0 0
        %969 = vmatpush2.bf16.msra.mxu0 0
        %970 = vmatprep.subr.bf16.mxu0 0
        %971 = vmatpush2.bf16.msra.mxu0 0
        %972 = vmatprep.subr.bf16.mxu0 0
        %973 = vmatpush2.bf16.msra.mxu0 0
        %974 = vmatprep.subr.bf16.mxu0 0
        %975 = vmatpush2.bf16.msra.mxu0 0
        %976 = vmatprep.subr.bf16.mxu0 0
        %977 = vmatpush2.bf16.msra.mxu0 0
        %978 = vmatprep.subr.bf16.mxu0 0
        %979 = vmatpush2.bf16.msra.mxu0 0
        %980 = vmatprep.subr.bf16.mxu0 0
        %981 = vmatpush2.bf16.msra.mxu0 0
        %982 = vmatprep.mubr.bf16.mxu0 0
        %983 = vmatmul.mubr.bf16.gmra.mxu0 %v948
        %v984 = vpop.f32.mrf.mxu0
        %v985 = vadd.f32 0.0, %v984
        %v986 = vpop.f32.mrf.mxu0
        %v987 = vpop.f32.mrf.mxu0
        %v988 = vpop.f32.mrf.mxu0
        %989 = vdwg.mxu0
        %v998 = vunpack.c.l.b16 %v905
        %v999 = vunpack.c.l.b16 %v906
        %v1000 = vunpack.c.l.b16 %v907
        %v1001 = vunpack.c.l.b16 %v908
        %v1002 = vunpack.c.l.b16 %v909
        %v1003 = vunpack.c.l.b16 %v910
        %v1004 = vunpack.c.l.b16 %v911
        %v1005 = vunpack.c.l.b16 %v912
        %v1006 = vpack.c.b16 %v999, %v998
        %v1007 = vpack.c.b16 %v1001, %v1000
        %v1008 = vpack.c.b16 %v1003, %v1002
        %v1009 = vpack.c.b16 %v1005, %v1004
        %v1015 = vsel %vm946, %v904, 0
        %1017 = vmatprep.subr.bf16.mxu0 0
        %1018 = vmatpush1.bf16.msra.mxu0 0
        %1019 = vmatprep.subr.bf16.mxu0 0
        %1020 = vmatpush1.bf16.msra.mxu0 0
        %1021 = vmatprep.subr.bf16.mxu0 0
        %1022 = vmatpush1.bf16.msra.mxu0 0
        %1023 = vmatprep.subr.bf16.mxu0 0
        %1024 = vmatpush1.bf16.msra.mxu0 0
        %1025 = vmatprep.subr.bf16.mxu0 0
        %1026 = vmatpush1.bf16.msra.mxu0 %v1009
        %1027 = vmatprep.subr.bf16.mxu0 0
        %1028 = vmatpush1.bf16.msra.mxu0 %v1008
        %1029 = vmatprep.subr.bf16.mxu0 0
        %1030 = vmatpush1.bf16.msra.mxu0 %v1007
        %1031 = vmatprep.subr.bf16.mxu0 0
        %1032 = vmatpush1.bf16.msra.mxu0 %v1006
        %1033 = vmatprep.subr.bf16.mxu0 0
        %1034 = vmatpush2.bf16.msra.mxu0 0
        %1035 = vmatprep.subr.bf16.mxu0 0
        %1036 = vmatpush2.bf16.msra.mxu0 0
        %1037 = vmatprep.subr.bf16.mxu0 0
        %1038 = vmatpush2.bf16.msra.mxu0 0
        %1039 = vmatprep.subr.bf16.mxu0 0
        %1040 = vmatpush2.bf16.msra.mxu0 0
        %1041 = vmatprep.subr.bf16.mxu0 0
        %1042 = vmatpush2.bf16.msra.mxu0 0
        %1043 = vmatprep.subr.bf16.mxu0 0
        %1044 = vmatpush2.bf16.msra.mxu0 0
        %1045 = vmatprep.subr.bf16.mxu0 0
        %1046 = vmatpush2.bf16.msra.mxu0 0
        %1047 = vmatprep.subr.bf16.mxu0 0
        %1048 = vmatpush2.bf16.msra.mxu0 0
        %1049 = vmatprep.mubr.bf16.mxu0 0
        %1050 = vmatmul.mubr.bf16.gmra.mxu0 %v1015
        %v1051 = vpop.f32.mrf.mxu0
        %v1052 = vadd.f32 %v985, %v1051
        %v1053 = vpop.f32.mrf.mxu0
        %v1054 = vpop.f32.mrf.mxu0
        %v1055 = vpop.f32.mrf.mxu0
        %1056 = vdwg.mxu0
        %v1057 = vpack.c.bf16 %v895, %v895
        %v1058 = vld [vmem:[#allocation11] sm:$0xf]
        %v1059 = vld [vmem:[#allocation11 + $0x4] sm:$0xf]
        %v1060 = vld [vmem:[#allocation11 + $0x8] sm:$0xf]
        %v1061 = vld [vmem:[#allocation11 + $0xc] sm:$0xf]
        %v1062 = vld [vmem:[#allocation11 + $0x10] sm:$0xf]
        %v1063 = vld [vmem:[#allocation11 + $0x14] sm:$0xf]
        %v1064 = vld [vmem:[#allocation11 + $0x18] sm:$0xf]
        %v1065 = vld [vmem:[#allocation11 + $0x1c] sm:$0xf]
        %v1074 = vunpack.c.l.b16 %v1058
        %v1075 = vunpack.c.l.b16 %v1059
        %v1076 = vunpack.c.l.b16 %v1060
        %v1077 = vunpack.c.l.b16 %v1061
        %v1078 = vunpack.c.l.b16 %v1062
        %v1079 = vunpack.c.l.b16 %v1063
        %v1080 = vunpack.c.l.b16 %v1064
        %v1081 = vunpack.c.l.b16 %v1065
        %v1082 = vpack.c.b16 %v1075, %v1074
        %v1083 = vpack.c.b16 %v1077, %v1076
        %v1084 = vpack.c.b16 %v1079, %v1078
        %v1085 = vpack.c.b16 %v1081, %v1080
        %v1091 = vsel %vm946, %v1057, 0
        %1093 = vmatprep.subr.bf16.mxu0 0
        %1094 = vmatpush1.bf16.msra.mxu0 0
        %1095 = vmatprep.subr.bf16.mxu0 0
        %1096 = vmatpush1.bf16.msra.mxu0 0
        %1097 = vmatprep.subr.bf16.mxu0 0
        %1098 = vmatpush1.bf16.msra.mxu0 0
        %1099 = vmatprep.subr.bf16.mxu0 0
        %1100 = vmatpush1.bf16.msra.mxu0 0
        %1101 = vmatprep.subr.bf16.mxu0 0
        %1102 = vmatpush1.bf16.msra.mxu0 %v1085
        %1103 = vmatprep.subr.bf16.mxu0 0
        %1104 = vmatpush1.bf16.msra.mxu0 %v1084
        %1105 = vmatprep.subr.bf16.mxu0 0
        %1106 = vmatpush1.bf16.msra.mxu0 %v1083
        %1107 = vmatprep.subr.bf16.mxu0 0
        %1108 = vmatpush1.bf16.msra.mxu0 %v1082
        %1109 = vmatprep.subr.bf16.mxu0 0
        %1110 = vmatpush2.bf16.msra.mxu0 0
        %1111 = vmatprep.subr.bf16.mxu0 0
        %1112 = vmatpush2.bf16.msra.mxu0 0
        %1113 = vmatprep.subr.bf16.mxu0 0
        %1114 = vmatpush2.bf16.msra.mxu0 0
        %1115 = vmatprep.subr.bf16.mxu0 0
        %1116 = vmatpush2.bf16.msra.mxu0 0
        %1117 = vmatprep.subr.bf16.mxu0 0
        %1118 = vmatpush2.bf16.msra.mxu0 0
        %1119 = vmatprep.subr.bf16.mxu0 0
        %1120 = vmatpush2.bf16.msra.mxu0 0
        %1121 = vmatprep.subr.bf16.mxu0 0
        %1122 = vmatpush2.bf16.msra.mxu0 0
        %1123 = vmatprep.subr.bf16.mxu0 0
        %1124 = vmatpush2.bf16.msra.mxu0 0
        %1125 = vmatprep.mubr.bf16.mxu0 0
        %1126 = vmatmul.mubr.bf16.gmra.mxu0 %v1091
        %v1127 = vpop.f32.mrf.mxu0
        %v1128 = vadd.f32 0.0, %v1127
        %v1129 = vpop.f32.mrf.mxu0
        %v1130 = vpop.f32.mrf.mxu0
        %v1131 = vpop.f32.mrf.mxu0
        %1132 = vdwg.mxu0
        %v1133 = vadd.f32 %v1052, %v1128
        %v1134 = vld [vmem:[#allocation13] sm:$0x1]
        %v1136 = vlaneseq
        %v1137 = vshrl.u32 %v1136, 7
        %v1138 = vsub.s32 0, %v1137
        %v1139 = vrot.slane %v1134, %v1138
        %v1141 = vadd.f32 %v1133, %v1139
        %v1142 = vmax.f32 %v1141, 0.0
        %1143 = vmatprep.subr.bf16.mxu0 0
        %1144 = vmatpush1.bf16.msra.mxu0 0
        %1145 = vmatprep.subr.bf16.mxu0 0
        %1146 = vmatpush1.bf16.msra.mxu0 0
        %1147 = vmatprep.subr.bf16.mxu0 0
        %1148 = vmatpush1.bf16.msra.mxu0 0
        %1149 = vmatprep.subr.bf16.mxu0 0
        %1150 = vmatpush1.bf16.msra.mxu0 0
        %1151 = vmatprep.subr.bf16.mxu0 0
        %1152 = vmatpush1.bf16.msra.mxu0 %v941
        %1153 = vmatprep.subr.bf16.mxu0 0
        %1154 = vmatpush1.bf16.msra.mxu0 %v940
        %1155 = vmatprep.subr.bf16.mxu0 0
        %1156 = vmatpush1.bf16.msra.mxu0 %v939
        %1157 = vmatprep.subr.bf16.mxu0 0
        %1158 = vmatpush1.bf16.msra.mxu0 %v938
        %1159 = vmatprep.subr.bf16.mxu0 0
        %1160 = vmatpush2.bf16.msra.mxu0 0
        %1161 = vmatprep.subr.bf16.mxu0 0
        %1162 = vmatpush2.bf16.msra.mxu0 0
        %1163 = vmatprep.subr.bf16.mxu0 0
        %1164 = vmatpush2.bf16.msra.mxu0 0
        %1165 = vmatprep.subr.bf16.mxu0 0
        %1166 = vmatpush2.bf16.msra.mxu0 0
        %1167 = vmatprep.subr.bf16.mxu0 0
        %1168 = vmatpush2.bf16.msra.mxu0 0
        %1169 = vmatprep.subr.bf16.mxu0 0
        %1170 = vmatpush2.bf16.msra.mxu0 0
        %1171 = vmatprep.subr.bf16.mxu0 0
        %1172 = vmatpush2.bf16.msra.mxu0 0
        %1173 = vmatprep.subr.bf16.mxu0 0
        %1174 = vmatpush2.bf16.msra.mxu0 0
        %1175 = vmatprep.mubr.bf16.mxu0 0
        %1176 = vmatmul.mubr.bf16.gmra.mxu0 %v1091
        %v1177 = vpop.f32.mrf.mxu0
        %v1178 = vadd.f32 0.0, %v1177
        %v1179 = vpop.f32.mrf.mxu0
        %v1180 = vpop.f32.mrf.mxu0
        %v1181 = vpop.f32.mrf.mxu0
        %1182 = vdwg.mxu0
        %1183 = vmatprep.subr.bf16.mxu0 0
        %1184 = vmatpush1.bf16.msra.mxu0 0
        %1185 = vmatprep.subr.bf16.mxu0 0
        %1186 = vmatpush1.bf16.msra.mxu0 0
        %1187 = vmatprep.subr.bf16.mxu0 0
        %1188 = vmatpush1.bf16.msra.mxu0 0
        %1189 = vmatprep.subr.bf16.mxu0 0
        %1190 = vmatpush1.bf16.msra.mxu0 0
        %1191 = vmatprep.subr.bf16.mxu0 0
        %1192 = vmatpush1.bf16.msra.mxu0 %v1009
        %1193 = vmatprep.subr.bf16.mxu0 0
        %1194 = vmatpush1.bf16.msra.mxu0 %v1008
        %1195 = vmatprep.subr.bf16.mxu0 0
        %1196 = vmatpush1.bf16.msra.mxu0 %v1007
        %1197 = vmatprep.subr.bf16.mxu0 0
        %1198 = vmatpush1.bf16.msra.mxu0 %v1006
        %1199 = vmatprep.subr.bf16.mxu0 0
        %1200 = vmatpush2.bf16.msra.mxu0 0
        %1201 = vmatprep.subr.bf16.mxu0 0
        %1202 = vmatpush2.bf16.msra.mxu0 0
        %1203 = vmatprep.subr.bf16.mxu0 0
        %1204 = vmatpush2.bf16.msra.mxu0 0
        %1205 = vmatprep.subr.bf16.mxu0 0
        %1206 = vmatpush2.bf16.msra.mxu0 0
        %1207 = vmatprep.subr.bf16.mxu0 0
        %1208 = vmatpush2.bf16.msra.mxu0 0
        %1209 = vmatprep.subr.bf16.mxu0 0
        %1210 = vmatpush2.bf16.msra.mxu0 0
        %1211 = vmatprep.subr.bf16.mxu0 0
        %1212 = vmatpush2.bf16.msra.mxu0 0
        %1213 = vmatprep.subr.bf16.mxu0 0
        %1214 = vmatpush2.bf16.msra.mxu0 0
        %1215 = vmatprep.mubr.bf16.mxu0 0
        %1216 = vmatmul.mubr.bf16.gmra.mxu0 %v948
        %v1217 = vpop.f32.mrf.mxu0
        %v1218 = vadd.f32 %v1178, %v1217
        %v1219 = vpop.f32.mrf.mxu0
        %v1220 = vpop.f32.mrf.mxu0
        %v1221 = vpop.f32.mrf.mxu0
        %1222 = vdwg.mxu0
        %v1223 = vpack.c.bf16 %v903, %v903
        %v1225 = vsel %vm946, %v1223, 0
        %1227 = vmatprep.subr.bf16.mxu0 0
        %1228 = vmatpush1.bf16.msra.mxu0 0
        %1229 = vmatprep.subr.bf16.mxu0 0
        %1230 = vmatpush1.bf16.msra.mxu0 0
        %1231 = vmatprep.subr.bf16.mxu0 0
        %1232 = vmatpush1.bf16.msra.mxu0 0
        %1233 = vmatprep.subr.bf16.mxu0 0
        %1234 = vmatpush1.bf16.msra.mxu0 0
        %1235 = vmatprep.subr.bf16.mxu0 0
        %1236 = vmatpush1.bf16.msra.mxu0 %v1085
        %1237 = vmatprep.subr.bf16.mxu0 0
        %1238 = vmatpush1.bf16.msra.mxu0 %v1084
        %1239 = vmatprep.subr.bf16.mxu0 0
        %1240 = vmatpush1.bf16.msra.mxu0 %v1083
        %1241 = vmatprep.subr.bf16.mxu0 0
        %1242 = vmatpush1.bf16.msra.mxu0 %v1082
        %1243 = vmatprep.subr.bf16.mxu0 0
        %1244 = vmatpush2.bf16.msra.mxu0 0
        %1245 = vmatprep.subr.bf16.mxu0 0
        %1246 = vmatpush2.bf16.msra.mxu0 0
        %1247 = vmatprep.subr.bf16.mxu0 0
        %1248 = vmatpush2.bf16.msra.mxu0 0
        %1249 = vmatprep.subr.bf16.mxu0 0
        %1250 = vmatpush2.bf16.msra.mxu0 0
        %1251 = vmatprep.subr.bf16.mxu0 0
        %1252 = vmatpush2.bf16.msra.mxu0 0
        %1253 = vmatprep.subr.bf16.mxu0 0
        %1254 = vmatpush2.bf16.msra.mxu0 0
        %1255 = vmatprep.subr.bf16.mxu0 0
        %1256 = vmatpush2.bf16.msra.mxu0 0
        %1257 = vmatprep.subr.bf16.mxu0 0
        %1258 = vmatpush2.bf16.msra.mxu0 0
        %1259 = vmatprep.mubr.bf16.mxu0 0
        %1260 = vmatmul.mubr.bf16.gmra.mxu0 %v1225
        %v1261 = vpop.f32.mrf.mxu0
        %v1262 = vadd.f32 0.0, %v1261
        %v1263 = vpop.f32.mrf.mxu0
        %v1264 = vpop.f32.mrf.mxu0
        %v1265 = vpop.f32.mrf.mxu0
        %1266 = vdwg.mxu0
        %v1267 = vadd.f32 %v1218, %v1262
        %v1268 = vadd.f32 %v1267, %v1139
        %v1269 = vmax.f32 %v1268, 0.0
        %v1270 = vmax.f32 %v1142, %v1269
        %v1272 = vrot.slane %v1270, 7
        %v1274 = vsel %vm833, %v1270, %v1272
        %v1275 = vrot.slane %v1270, 1
        %v1277 = vsel %vm838, %v1275, %v1270
        %v1278 = vpack.c.bf16 %v1274, %v1274
        %v1279 = vld [vmem:[#allocation14] sm:$0xf]
        %v1280 = vld [vmem:[#allocation14 + $0x4] sm:$0xf]
        %v1281 = vld [vmem:[#allocation14 + $0x8] sm:$0xf]
        %v1282 = vld [vmem:[#allocation14 + $0xc] sm:$0xf]
        %v1283 = vld [vmem:[#allocation14 + $0x10] sm:$0xf]
        %v1284 = vld [vmem:[#allocation14 + $0x14] sm:$0xf]
        %v1285 = vld [vmem:[#allocation14 + $0x18] sm:$0xf]
        %v1286 = vld [vmem:[#allocation14 + $0x1c] sm:$0xf]
        %v1287 = vpack.c.bf16 %v1270, %v1270
        %v1288 = vld [vmem:[#allocation16] sm:$0xf]
        %v1289 = vld [vmem:[#allocation16 + $0x4] sm:$0xf]
        %v1290 = vld [vmem:[#allocation16 + $0x8] sm:$0xf]
        %v1291 = vld [vmem:[#allocation16 + $0xc] sm:$0xf]
        %v1292 = vld [vmem:[#allocation16 + $0x10] sm:$0xf]
        %v1293 = vld [vmem:[#allocation16 + $0x14] sm:$0xf]
        %v1294 = vld [vmem:[#allocation16 + $0x18] sm:$0xf]
        %v1295 = vld [vmem:[#allocation16 + $0x1c] sm:$0xf]
        %v1304 = vunpack.c.l.b16 %v1288
        %v1305 = vunpack.c.l.b16 %v1289
        %v1306 = vunpack.c.l.b16 %v1290
        %v1307 = vunpack.c.l.b16 %v1291
        %v1308 = vunpack.c.l.b16 %v1292
        %v1309 = vunpack.c.l.b16 %v1293
        %v1310 = vunpack.c.l.b16 %v1294
        %v1311 = vunpack.c.l.b16 %v1295
        %v1312 = vpack.c.b16 %v1305, %v1304
        %v1313 = vpack.c.b16 %v1307, %v1306
        %v1314 = vpack.c.b16 %v1309, %v1308
        %v1315 = vpack.c.b16 %v1311, %v1310
        %v1321 = vsel %vm946, %v1287, 0
        %1323 = vmatprep.subr.bf16.mxu0 0
        %1324 = vmatpush1.bf16.msra.mxu0 0
        %1325 = vmatprep.subr.bf16.mxu0 0
        %1326 = vmatpush1.bf16.msra.mxu0 0
        %1327 = vmatprep.subr.bf16.mxu0 0
        %1328 = vmatpush1.bf16.msra.mxu0 0
        %1329 = vmatprep.subr.bf16.mxu0 0
        %1330 = vmatpush1.bf16.msra.mxu0 0
        %1331 = vmatprep.subr.bf16.mxu0 0
        %1332 = vmatpush1.bf16.msra.mxu0 %v1315
        %1333 = vmatprep.subr.bf16.mxu0 0
        %1334 = vmatpush1.bf16.msra.mxu0 %v1314
        %1335 = vmatprep.subr.bf16.mxu0 0
        %1336 = vmatpush1.bf16.msra.mxu0 %v1313
        %1337 = vmatprep.subr.bf16.mxu0 0
        %1338 = vmatpush1.bf16.msra.mxu0 %v1312
        %1339 = vmatprep.subr.bf16.mxu0 0
        %1340 = vmatpush2.bf16.msra.mxu0 0
        %1341 = vmatprep.subr.bf16.mxu0 0
        %1342 = vmatpush2.bf16.msra.mxu0 0
        %1343 = vmatprep.subr.bf16.mxu0 0
        %1344 = vmatpush2.bf16.msra.mxu0 0
        %1345 = vmatprep.subr.bf16.mxu0 0
        %1346 = vmatpush2.bf16.msra.mxu0 0
        %1347 = vmatprep.subr.bf16.mxu0 0
        %1348 = vmatpush2.bf16.msra.mxu0 0
        %1349 = vmatprep.subr.bf16.mxu0 0
        %1350 = vmatpush2.bf16.msra.mxu0 0
        %1351 = vmatprep.subr.bf16.mxu0 0
        %1352 = vmatpush2.bf16.msra.mxu0 0
        %1353 = vmatprep.subr.bf16.mxu0 0
        %1354 = vmatpush2.bf16.msra.mxu0 0
        %1355 = vmatprep.mubr.bf16.mxu0 0
        %1356 = vmatmul.mubr.bf16.gmra.mxu0 %v1321
        %v1357 = vpop.f32.mrf.mxu0
        %v1358 = vadd.f32 0.0, %v1357
        %v1359 = vpop.f32.mrf.mxu0
        %v1360 = vpop.f32.mrf.mxu0
        %v1361 = vpop.f32.mrf.mxu0
        %1362 = vdwg.mxu0
        %v1371 = vunpack.c.l.b16 %v1279
        %v1372 = vunpack.c.l.b16 %v1280
        %v1373 = vunpack.c.l.b16 %v1281
        %v1374 = vunpack.c.l.b16 %v1282
        %v1375 = vunpack.c.l.b16 %v1283
        %v1376 = vunpack.c.l.b16 %v1284
        %v1377 = vunpack.c.l.b16 %v1285
        %v1378 = vunpack.c.l.b16 %v1286
        %v1379 = vpack.c.b16 %v1372, %v1371
        %v1380 = vpack.c.b16 %v1374, %v1373
        %v1381 = vpack.c.b16 %v1376, %v1375
        %v1382 = vpack.c.b16 %v1378, %v1377
        %v1388 = vsel %vm946, %v1278, 0
        %1390 = vmatprep.subr.bf16.mxu0 0
        %1391 = vmatpush1.bf16.msra.mxu0 0
        %1392 = vmatprep.subr.bf16.mxu0 0
        %1393 = vmatpush1.bf16.msra.mxu0 0
        %1394 = vmatprep.subr.bf16.mxu0 0
        %1395 = vmatpush1.bf16.msra.mxu0 0
        %1396 = vmatprep.subr.bf16.mxu0 0
        %1397 = vmatpush1.bf16.msra.mxu0 0
        %1398 = vmatprep.subr.bf16.mxu0 0
        %1399 = vmatpush1.bf16.msra.mxu0 %v1382
        %1400 = vmatprep.subr.bf16.mxu0 0
        %1401 = vmatpush1.bf16.msra.mxu0 %v1381
        %1402 = vmatprep.subr.bf16.mxu0 0
        %1403 = vmatpush1.bf16.msra.mxu0 %v1380
        %1404 = vmatprep.subr.bf16.mxu0 0
        %1405 = vmatpush1.bf16.msra.mxu0 %v1379
        %1406 = vmatprep.subr.bf16.mxu0 0
        %1407 = vmatpush2.bf16.msra.mxu0 0
        %1408 = vmatprep.subr.bf16.mxu0 0
        %1409 = vmatpush2.bf16.msra.mxu0 0
        %1410 = vmatprep.subr.bf16.mxu0 0
        %1411 = vmatpush2.bf16.msra.mxu0 0
        %1412 = vmatprep.subr.bf16.mxu0 0
        %1413 = vmatpush2.bf16.msra.mxu0 0
        %1414 = vmatprep.subr.bf16.mxu0 0
        %1415 = vmatpush2.bf16.msra.mxu0 0
        %1416 = vmatprep.subr.bf16.mxu0 0
        %1417 = vmatpush2.bf16.msra.mxu0 0
        %1418 = vmatprep.subr.bf16.mxu0 0
        %1419 = vmatpush2.bf16.msra.mxu0 0
        %1420 = vmatprep.subr.bf16.mxu0 0
        %1421 = vmatpush2.bf16.msra.mxu0 0
        %1422 = vmatprep.mubr.bf16.mxu0 0
        %1423 = vmatmul.mubr.bf16.gmra.mxu0 %v1388
        %v1424 = vpop.f32.mrf.mxu0
        %v1425 = vadd.f32 %v1358, %v1424
        %v1426 = vpop.f32.mrf.mxu0
        %v1427 = vpop.f32.mrf.mxu0
        %v1428 = vpop.f32.mrf.mxu0
        %1429 = vdwg.mxu0
        %v1430 = vpack.c.bf16 %v1277, %v1277
        %v1431 = vld [vmem:[#allocation17] sm:$0xf]
        %v1432 = vld [vmem:[#allocation17 + $0x4] sm:$0xf]
        %v1433 = vld [vmem:[#allocation17 + $0x8] sm:$0xf]
        %v1434 = vld [vmem:[#allocation17 + $0xc] sm:$0xf]
        %v1435 = vld [vmem:[#allocation17 + $0x10] sm:$0xf]
        %v1436 = vld [vmem:[#allocation17 + $0x14] sm:$0xf]
        %v1437 = vld [vmem:[#allocation17 + $0x18] sm:$0xf]
        %v1438 = vld [vmem:[#allocation17 + $0x1c] sm:$0xf]
        %v1447 = vunpack.c.l.b16 %v1431
        %v1448 = vunpack.c.l.b16 %v1432
        %v1449 = vunpack.c.l.b16 %v1433
        %v1450 = vunpack.c.l.b16 %v1434
        %v1451 = vunpack.c.l.b16 %v1435
        %v1452 = vunpack.c.l.b16 %v1436
        %v1453 = vunpack.c.l.b16 %v1437
        %v1454 = vunpack.c.l.b16 %v1438
        %v1455 = vpack.c.b16 %v1448, %v1447
        %v1456 = vpack.c.b16 %v1450, %v1449
        %v1457 = vpack.c.b16 %v1452, %v1451
        %v1458 = vpack.c.b16 %v1454, %v1453
        %v1464 = vsel %vm946, %v1430, 0
        %1466 = vmatprep.subr.bf16.mxu0 0
        %1467 = vmatpush1.bf16.msra.mxu0 0
        %1468 = vmatprep.subr.bf16.mxu0 0
        %1469 = vmatpush1.bf16.msra.mxu0 0
        %1470 = vmatprep.subr.bf16.mxu0 0
        %1471 = vmatpush1.bf16.msra.mxu0 0
        %1472 = vmatprep.subr.bf16.mxu0 0
        %1473 = vmatpush1.bf16.msra.mxu0 0
        %1474 = vmatprep.subr.bf16.mxu0 0
        %1475 = vmatpush1.bf16.msra.mxu0 %v1458
        %1476 = vmatprep.subr.bf16.mxu0 0
        %1477 = vmatpush1.bf16.msra.mxu0 %v1457
        %1478 = vmatprep.subr.bf16.mxu0 0
        %1479 = vmatpush1.bf16.msra.mxu0 %v1456
        %1480 = vmatprep.subr.bf16.mxu0 0
        %1481 = vmatpush1.bf16.msra.mxu0 %v1455
        %1482 = vmatprep.subr.bf16.mxu0 0
        %1483 = vmatpush2.bf16.msra.mxu0 0
        %1484 = vmatprep.subr.bf16.mxu0 0
        %1485 = vmatpush2.bf16.msra.mxu0 0
        %1486 = vmatprep.subr.bf16.mxu0 0
        %1487 = vmatpush2.bf16.msra.mxu0 0
        %1488 = vmatprep.subr.bf16.mxu0 0
        %1489 = vmatpush2.bf16.msra.mxu0 0
        %1490 = vmatprep.subr.bf16.mxu0 0
        %1491 = vmatpush2.bf16.msra.mxu0 0
        %1492 = vmatprep.subr.bf16.mxu0 0
        %1493 = vmatpush2.bf16.msra.mxu0 0
        %1494 = vmatprep.subr.bf16.mxu0 0
        %1495 = vmatpush2.bf16.msra.mxu0 0
        %1496 = vmatprep.subr.bf16.mxu0 0
        %1497 = vmatpush2.bf16.msra.mxu0 0
        %1498 = vmatprep.mubr.bf16.mxu0 0
        %1499 = vmatmul.mubr.bf16.gmra.mxu0 %v1464
        %v1500 = vpop.f32.mrf.mxu0
        %v1501 = vadd.f32 0.0, %v1500
        %v1502 = vpop.f32.mrf.mxu0
        %v1503 = vpop.f32.mrf.mxu0
        %v1504 = vpop.f32.mrf.mxu0
        %1505 = vdwg.mxu0
        %v1506 = vadd.f32 %v1425, %v1501
        %v1507 = vld [vmem:[#allocation19] sm:$0x1]
        %v1509 = vlaneseq
        %v1510 = vshrl.u32 %v1509, 7
        %v1511 = vsub.s32 0, %v1510
        %v1512 = vrot.slane %v1507, %v1511
        %v1514 = vadd.f32 %v1506, %v1512
        %v1515 = vmax.f32 %v1514, 0.0
        %v1517 = vrot.slane %v1515, 7
        %v1519 = vsel %vm833, %v1515, %v1517
        %v1520 = vrot.slane %v1515, 1
        %v1522 = vsel %vm838, %v1520, %v1515
        %v1523 = vpack.c.bf16 %v1519, %v1519
        %v1524 = vld [vmem:[#allocation20] sm:$0xf]
        %v1525 = vld [vmem:[#allocation20 + $0x4] sm:$0xf]
        %v1526 = vld [vmem:[#allocation20 + $0x8] sm:$0xf]
        %v1527 = vld [vmem:[#allocation20 + $0xc] sm:$0xf]
        %v1528 = vld [vmem:[#allocation20 + $0x10] sm:$0xf]
        %v1529 = vld [vmem:[#allocation20 + $0x14] sm:$0xf]
        %v1530 = vld [vmem:[#allocation20 + $0x18] sm:$0xf]
        %v1531 = vld [vmem:[#allocation20 + $0x1c] sm:$0xf]
        %v1532 = vld [vmem:[#allocation20 + $0x20] sm:$0xf]
        %v1533 = vld [vmem:[#allocation20 + $0x24] sm:$0xf]
        %v1534 = vld [vmem:[#allocation20 + $0x28] sm:$0xf]
        %v1535 = vld [vmem:[#allocation20 + $0x2c] sm:$0xf]
        %v1536 = vld [vmem:[#allocation20 + $0x30] sm:$0xf]
        %v1537 = vld [vmem:[#allocation20 + $0x34] sm:$0xf]
        %v1538 = vld [vmem:[#allocation20 + $0x38] sm:$0xf]
        %v1539 = vld [vmem:[#allocation20 + $0x3c] sm:$0xf]
        %v1540 = vpack.c.bf16 %v1515, %v1515
        %v1541 = vld [vmem:[%s15] sm:$0xf]
        %v1542 = vld [vmem:[%s15 + $0x4] sm:$0xf]
        %v1543 = vld [vmem:[%s15 + $0x8] sm:$0xf]
        %v1544 = vld [vmem:[%s15 + $0xc] sm:$0xf]
        %v1545 = vld [vmem:[%s15 + $0x10] sm:$0xf]
        %v1546 = vld [vmem:[%s15 + $0x14] sm:$0xf]
        %v1547 = vld [vmem:[%s15 + $0x18] sm:$0xf]
        %v1548 = vld [vmem:[%s15 + $0x1c] sm:$0xf]
        %v1549 = vld [vmem:[%s15 + $0x20] sm:$0xf]
        %v1550 = vld [vmem:[%s15 + $0x24] sm:$0xf]
        %v1551 = vld [vmem:[%s15 + $0x28] sm:$0xf]
        %v1552 = vld [vmem:[%s15 + $0x2c] sm:$0xf]
        %v1553 = vld [vmem:[%s15 + $0x30] sm:$0xf]
        %v1554 = vld [vmem:[%s15 + $0x34] sm:$0xf]
        %v1555 = vld [vmem:[%s15 + $0x38] sm:$0xf]
        %v1556 = vld [vmem:[%s15 + $0x3c] sm:$0xf]
        %v1573 = vunpack.c.l.b16 %v1541
        %v1574 = vunpack.c.l.b16 %v1542
        %v1575 = vunpack.c.l.b16 %v1543
        %v1576 = vunpack.c.l.b16 %v1544
        %v1577 = vunpack.c.l.b16 %v1545
        %v1578 = vunpack.c.l.b16 %v1546
        %v1579 = vunpack.c.l.b16 %v1547
        %v1580 = vunpack.c.l.b16 %v1548
        %v1581 = vunpack.c.l.b16 %v1549
        %v1582 = vunpack.c.l.b16 %v1550
        %v1583 = vunpack.c.l.b16 %v1551
        %v1584 = vunpack.c.l.b16 %v1552
        %v1585 = vunpack.c.l.b16 %v1553
        %v1586 = vunpack.c.l.b16 %v1554
        %v1587 = vunpack.c.l.b16 %v1555
        %v1588 = vunpack.c.l.b16 %v1556
        %v1589 = vpack.c.b16 %v1574, %v1573
        %v1590 = vpack.c.b16 %v1576, %v1575
        %v1591 = vpack.c.b16 %v1578, %v1577
        %v1592 = vpack.c.b16 %v1580, %v1579
        %v1593 = vpack.c.b16 %v1582, %v1581
        %v1594 = vpack.c.b16 %v1584, %v1583
        %v1595 = vpack.c.b16 %v1586, %v1585
        %v1596 = vpack.c.b16 %v1588, %v1587
        %1605 = vmatprep.subr.bf16.mxu0 0
        %1606 = vmatpush1.bf16.msra.mxu0 %v1596
        %1607 = vmatprep.subr.bf16.mxu0 0
        %1608 = vmatpush1.bf16.msra.mxu0 %v1595
        %1609 = vmatprep.subr.bf16.mxu0 0
        %1610 = vmatpush1.bf16.msra.mxu0 %v1594
        %1611 = vmatprep.subr.bf16.mxu0 0
        %1612 = vmatpush1.bf16.msra.mxu0 %v1593
        %1613 = vmatprep.subr.bf16.mxu0 0
        %1614 = vmatpush1.bf16.msra.mxu0 %v1592
        %1615 = vmatprep.subr.bf16.mxu0 0
        %1616 = vmatpush1.bf16.msra.mxu0 %v1591
        %1617 = vmatprep.subr.bf16.mxu0 0
        %1618 = vmatpush1.bf16.msra.mxu0 %v1590
        %1619 = vmatprep.subr.bf16.mxu0 0
        %1620 = vmatpush1.bf16.msra.mxu0 %v1589
        %1621 = vmatprep.subr.bf16.mxu0 0
        %1622 = vmatpush2.bf16.msra.mxu0 0
        %1623 = vmatprep.subr.bf16.mxu0 0
        %1624 = vmatpush2.bf16.msra.mxu0 0
        %1625 = vmatprep.subr.bf16.mxu0 0
        %1626 = vmatpush2.bf16.msra.mxu0 0
        %1627 = vmatprep.subr.bf16.mxu0 0
        %1628 = vmatpush2.bf16.msra.mxu0 0
        %1629 = vmatprep.subr.bf16.mxu0 0
        %1630 = vmatpush2.bf16.msra.mxu0 0
        %1631 = vmatprep.subr.bf16.mxu0 0
        %1632 = vmatpush2.bf16.msra.mxu0 0
        %1633 = vmatprep.subr.bf16.mxu0 0
        %1634 = vmatpush2.bf16.msra.mxu0 0
        %1635 = vmatprep.subr.bf16.mxu0 0
        %1636 = vmatpush2.bf16.msra.mxu0 0
        %1637 = vmatprep.mubr.bf16.mxu0 0
        %1638 = vmatmul.mubr.bf16.gmra.mxu0 %v1540
        %v1639 = vpop.f32.mrf.mxu0
        %v1640 = vadd.f32 0.0, %v1639
        %v1641 = vpop.f32.mrf.mxu0
        %v1642 = vpop.f32.mrf.mxu0
        %v1643 = vpop.f32.mrf.mxu0
        %1644 = vdwg.mxu0
        %v1661 = vunpack.c.l.b16 %v1524
        %v1662 = vunpack.c.l.b16 %v1525
        %v1663 = vunpack.c.l.b16 %v1526
        %v1664 = vunpack.c.l.b16 %v1527
        %v1665 = vunpack.c.l.b16 %v1528
        %v1666 = vunpack.c.l.b16 %v1529
        %v1667 = vunpack.c.l.b16 %v1530
        %v1668 = vunpack.c.l.b16 %v1531
        %v1669 = vunpack.c.l.b16 %v1532
        %v1670 = vunpack.c.l.b16 %v1533
        %v1671 = vunpack.c.l.b16 %v1534
        %v1672 = vunpack.c.l.b16 %v1535
        %v1673 = vunpack.c.l.b16 %v1536
        %v1674 = vunpack.c.l.b16 %v1537
        %v1675 = vunpack.c.l.b16 %v1538
        %v1676 = vunpack.c.l.b16 %v1539
        %v1677 = vpack.c.b16 %v1662, %v1661
        %v1678 = vpack.c.b16 %v1664, %v1663
        %v1679 = vpack.c.b16 %v1666, %v1665
        %v1680 = vpack.c.b16 %v1668, %v1667
        %v1681 = vpack.c.b16 %v1670, %v1669
        %v1682 = vpack.c.b16 %v1672, %v1671
        %v1683 = vpack.c.b16 %v1674, %v1673
        %v1684 = vpack.c.b16 %v1676, %v1675
        %1693 = vmatprep.subr.bf16.mxu0 0
        %1694 = vmatpush1.bf16.msra.mxu0 %v1684
        %1695 = vmatprep.subr.bf16.mxu0 0
        %1696 = vmatpush1.bf16.msra.mxu0 %v1683
        %1697 = vmatprep.subr.bf16.mxu0 0
        %1698 = vmatpush1.bf16.msra.mxu0 %v1682
        %1699 = vmatprep.subr.bf16.mxu0 0
        %1700 = vmatpush1.bf16.msra.mxu0 %v1681
        %1701 = vmatprep.subr.bf16.mxu0 0
        %1702 = vmatpush1.bf16.msra.mxu0 %v1680
        %1703 = vmatprep.subr.bf16.mxu0 0
        %1704 = vmatpush1.bf16.msra.mxu0 %v1679
        %1705 = vmatprep.subr.bf16.mxu0 0
        %1706 = vmatpush1.bf16.msra.mxu0 %v1678
        %1707 = vmatprep.subr.bf16.mxu0 0
        %1708 = vmatpush1.bf16.msra.mxu0 %v1677
        %1709 = vmatprep.subr.bf16.mxu0 0
        %1710 = vmatpush2.bf16.msra.mxu0 0
        %1711 = vmatprep.subr.bf16.mxu0 0
        %1712 = vmatpush2.bf16.msra.mxu0 0
        %1713 = vmatprep.subr.bf16.mxu0 0
        %1714 = vmatpush2.bf16.msra.mxu0 0
        %1715 = vmatprep.subr.bf16.mxu0 0
        %1716 = vmatpush2.bf16.msra.mxu0 0
        %1717 = vmatprep.subr.bf16.mxu0 0
        %1718 = vmatpush2.bf16.msra.mxu0 0
        %1719 = vmatprep.subr.bf16.mxu0 0
        %1720 = vmatpush2.bf16.msra.mxu0 0
        %1721 = vmatprep.subr.bf16.mxu0 0
        %1722 = vmatpush2.bf16.msra.mxu0 0
        %1723 = vmatprep.subr.bf16.mxu0 0
        %1724 = vmatpush2.bf16.msra.mxu0 0
        %1725 = vmatprep.mubr.bf16.mxu0 0
        %1726 = vmatmul.mubr.bf16.gmra.mxu0 %v1523
        %v1727 = vpop.f32.mrf.mxu0
        %v1728 = vadd.f32 %v1640, %v1727
        %v1729 = vpop.f32.mrf.mxu0
        %v1730 = vpop.f32.mrf.mxu0
        %v1731 = vpop.f32.mrf.mxu0
        %1732 = vdwg.mxu0
        %v1733 = vpack.c.bf16 %v1522, %v1522
        %v1734 = vld [vmem:[#allocation22] sm:$0xf]
        %v1735 = vld [vmem:[#allocation22 + $0x4] sm:$0xf]
        %v1736 = vld [vmem:[#allocation22 + $0x8] sm:$0xf]
        %v1737 = vld [vmem:[#allocation22 + $0xc] sm:$0xf]
        %v1738 = vld [vmem:[#allocation22 + $0x10] sm:$0xf]
        %v1739 = vld [vmem:[#allocation22 + $0x14] sm:$0xf]
        %v1740 = vld [vmem:[#allocation22 + $0x18] sm:$0xf]
        %v1741 = vld [vmem:[#allocation22 + $0x1c] sm:$0xf]
        %v1742 = vld [vmem:[#allocation22 + $0x20] sm:$0xf]
        %v1743 = vld [vmem:[#allocation22 + $0x24] sm:$0xf]
        %v1744 = vld [vmem:[#allocation22 + $0x28] sm:$0xf]
        %v1745 = vld [vmem:[#allocation22 + $0x2c] sm:$0xf]
        %v1746 = vld [vmem:[#allocation22 + $0x30] sm:$0xf]
        %v1747 = vld [vmem:[#allocation22 + $0x34] sm:$0xf]
        %v1748 = vld [vmem:[#allocation22 + $0x38] sm:$0xf]
        %v1749 = vld [vmem:[#allocation22 + $0x3c] sm:$0xf]
        %v1766 = vunpack.c.l.b16 %v1734
        %v1767 = vunpack.c.l.b16 %v1735
        %v1768 = vunpack.c.l.b16 %v1736
        %v1769 = vunpack.c.l.b16 %v1737
        %v1770 = vunpack.c.l.b16 %v1738
        %v1771 = vunpack.c.l.b16 %v1739
        %v1772 = vunpack.c.l.b16 %v1740
        %v1773 = vunpack.c.l.b16 %v1741
        %v1774 = vunpack.c.l.b16 %v1742
        %v1775 = vunpack.c.l.b16 %v1743
        %v1776 = vunpack.c.l.b16 %v1744
        %v1777 = vunpack.c.l.b16 %v1745
        %v1778 = vunpack.c.l.b16 %v1746
        %v1779 = vunpack.c.l.b16 %v1747
        %v1780 = vunpack.c.l.b16 %v1748
        %v1781 = vunpack.c.l.b16 %v1749
        %v1782 = vpack.c.b16 %v1767, %v1766
        %v1783 = vpack.c.b16 %v1769, %v1768
        %v1784 = vpack.c.b16 %v1771, %v1770
        %v1785 = vpack.c.b16 %v1773, %v1772
        %v1786 = vpack.c.b16 %v1775, %v1774
        %v1787 = vpack.c.b16 %v1777, %v1776
        %v1788 = vpack.c.b16 %v1779, %v1778
        %v1789 = vpack.c.b16 %v1781, %v1780
        %1798 = vmatprep.subr.bf16.mxu0 0
        %1799 = vmatpush1.bf16.msra.mxu0 %v1789
        %1800 = vmatprep.subr.bf16.mxu0 0
        %1801 = vmatpush1.bf16.msra.mxu0 %v1788
        %1802 = vmatprep.subr.bf16.mxu0 0
        %1803 = vmatpush1.bf16.msra.mxu0 %v1787
        %1804 = vmatprep.subr.bf16.mxu0 0
        %1805 = vmatpush1.bf16.msra.mxu0 %v1786
        %1806 = vmatprep.subr.bf16.mxu0 0
        %1807 = vmatpush1.bf16.msra.mxu0 %v1785
        %1808 = vmatprep.subr.bf16.mxu0 0
        %1809 = vmatpush1.bf16.msra.mxu0 %v1784
        %1810 = vmatprep.subr.bf16.mxu0 0
        %1811 = vmatpush1.bf16.msra.mxu0 %v1783
        %1812 = vmatprep.subr.bf16.mxu0 0
        %1813 = vmatpush1.bf16.msra.mxu0 %v1782
        %1814 = vmatprep.subr.bf16.mxu0 0
        %1815 = vmatpush2.bf16.msra.mxu0 0
        %1816 = vmatprep.subr.bf16.mxu0 0
        %1817 = vmatpush2.bf16.msra.mxu0 0
        %1818 = vmatprep.subr.bf16.mxu0 0
        %1819 = vmatpush2.bf16.msra.mxu0 0
        %1820 = vmatprep.subr.bf16.mxu0 0
        %1821 = vmatpush2.bf16.msra.mxu0 0
        %1822 = vmatprep.subr.bf16.mxu0 0
        %1823 = vmatpush2.bf16.msra.mxu0 0
        %1824 = vmatprep.subr.bf16.mxu0 0
        %1825 = vmatpush2.bf16.msra.mxu0 0
        %1826 = vmatprep.subr.bf16.mxu0 0
        %1827 = vmatpush2.bf16.msra.mxu0 0
        %1828 = vmatprep.subr.bf16.mxu0 0
        %1829 = vmatpush2.bf16.msra.mxu0 0
        %1830 = vmatprep.mubr.bf16.mxu0 0
        %1831 = vmatmul.mubr.bf16.gmra.mxu0 %v1733
        %v1832 = vpop.f32.mrf.mxu0
        %v1833 = vadd.f32 0.0, %v1832
        %v1834 = vpop.f32.mrf.mxu0
        %v1835 = vpop.f32.mrf.mxu0
        %v1836 = vpop.f32.mrf.mxu0
        %1837 = vdwg.mxu0
        %v1838 = vadd.f32 %v1728, %v1833
        %v1839 = vld [vmem:[%s17] sm:$0x1]
        %v1841 = vlaneseq
        %v1842 = vshrl.u32 %v1841, 7
        %v1843 = vsub.s32 0, %v1842
        %v1844 = vrot.slane %v1839, %v1843
        %v1846 = vadd.f32 %v1838, %v1844
        %v1847 = vmax.f32 %v1846, 0.0
        %v1848 = vld [vmem:[%s18] sm:$0x1]
        %v1850 = vlaneseq
        %v1851 = vshrl.u32 %v1850, 7
        %v1852 = vsub.s32 0, %v1851
        %v1853 = vrot.slane %v1848, %v1852
        %v1855 = vmul.f32 %v1847, %v1853
        %1856 = vadd.xlane.f32.xlu0 %v1855
        %v1857 = vpop.xlane.xlu0 %1856
        %v1858 = vld [vmem:[#allocation2] sm:$0x1]
        %v1860 = vlaneseq
        %v1861 = vshrl.u32 %v1860, 7
        %v1862 = vsub.s32 0, %v1861
        %v1863 = vrot.slane %v1858, %v1862
        %v1865 = vadd.f32 %v1857, %v1863
        %v1866 = vmax.f32 %v1865, -1.0
        %v1867 = vmin.f32 %v1866, 1.0
        %vm1868 = vcmask 7168
        %1869 = vst.msk [vmem:[%s822] sm:$0xff] %vm1868, %v1867
        %p1870 = scmp.lt.s32.totalorder %s40, 1
        %s1871 = scalar_select %p1870, %s40, 1
        %s1872 = smul.addr %s1871, 8
        %s1873 = scalar_lea.vmem %s20, %s1872
        // Predicated region
        $region153: #{tpu_custom_call.1} parent=99 // pred_check
          %p1874 = pneg %p488
        $region154: #{tpu_custom_call.1} parent=99 // pred_check_branch
          %1876 = sbr.rel (%p1874) target = $region156
        $region155: #{tpu_custom_call.1} parent=99 // pred_region
          _
        $region156: #{tpu_custom_call.1} parent=99 // pred_fallthru
          _
      $region100: #{tpu_custom_call.1} parent=5 // pred_fallthru
        _
      %p1877 = scmp.le.s32.totalorder 2, %s35
      // Predicated region
      $region157: #{tpu_custom_call.1} parent=5 // pred_check
        %p1878 = pneg %p1877
      $region158: #{tpu_custom_call.1} parent=5 // pred_check_branch
        %1880 = sbr.rel (%p1878) target = $region160
      $region159: #{tpu_custom_call.1} parent=5 // pred_region
        %s1881 = ssub.s32 %s35, 2
        // Predicated region
        $region161: #{tpu_custom_call.1} parent=159 // pred_check
          %p1882 = pneg %p494
        $region162: #{tpu_custom_call.1} parent=159 // pred_check_branch
          %1884 = sbr.rel (%p1882) target = $region164
        $region163: #{tpu_custom_call.1} parent=159 // pred_region
          %p1885 = scmp.lt.s32.totalorder %s41, 1
          %s1886 = scalar_select %p1885, %s41, 1
          %s1887 = smul.addr %s1886, 8
          %s1888 = scalar_lea.vmem %s20, %s1887
        $region164: #{tpu_custom_call.1} parent=159 // pred_fallthru
          _
      $region160: #{tpu_custom_call.1} parent=5 // pred_fallthru
        _
    $region6: #{tpu_custom_call.1} parent=1 // loop_footer
      %s39 = sadd.s32 1, %s35
    $region7: #{tpu_custom_call.1} parent=1 // loop_footer_branch
      %34 = sbr.rel target = $region3
    $region8: #{tpu_custom_call.1} parent=1 // loop_exit
      _
    %1889 = vsyncpa [#allocation4], 1
    %s1890 = scalar_lea.sflag [#allocation4], 1
    %1891 = vsyncpa %s1890, 1
    %1892 = vsyncpa [#allocation6], 1
    %1893 = vsyncpa [#allocation9], 1
    %1894 = vsyncpa [#allocation12], 1
    %1895 = vsyncpa [#allocation15], 1
    %1896 = vsyncpa [#allocation18], 1
    %1897 = vsyncpa [#allocation21], 1

</llo_original>
